<compile_context>
chip_gen: v6e
topology: v6e:2x2x1
jax: 0.10.0
libtpu: 0.0.40
codegen_flags: <defaults>
</compile_context>

<pallas_src>
import functools

import jax
import jax.numpy as jnp
from jax import lax
from jax.experimental import pallas as pl
from jax.experimental.pallas import tpu as pltpu


def attention_kernel(x_ref, w_qkv_ref, w_proj_ref, b_ref, o_ref,
                     qkv_ref, ctx_ref, *, scale, num_heads, head_dim, n_valid):
    # x_ref:      (N_pad, C)      current batch element (batch dim squeezed)
    # w_qkv_ref:  (C, 3C)         fused qkv projection weight (VMEM resident)
    # w_proj_ref: (C, C)          output projection weight (VMEM resident)
    # b_ref:      (1, C)          output projection bias
    # o_ref:      (N_pad, C)      output block (one lane-dense store / step)
    # qkv_ref:    (N_pad, 3C)     VMEM scratch holding the fused qkv result
    # ctx_ref:    (N_pad, C)      VMEM scratch holding concatenated head ctx
    n_pad, c = x_ref.shape
    d = head_dim

    # Fused QKV projection: one full-lane-width matmul on the MXU
    # (per-head width D would use <=50% of the MXU on v5e, <=25% on v6e/v7x).
    x = x_ref[...]
    qkv = jnp.dot(x, w_qkv_ref[...], preferred_element_type=jnp.float32)
    qkv_ref[...] = qkv.astype(qkv_ref.dtype)

    # Key-padding mask (only traced when the sequence was actually padded).
    if n_valid < n_pad:
        col = lax.broadcasted_iota(jnp.int32, (n_pad, n_pad), 1)
        key_mask = col < n_valid
    else:
        key_mask = None

    # Heads as a statically-unrolled in-kernel loop: no per-head grid step
    # overhead and no (N, C) accumulator revisit bookkeeping.
    for h in range(num_heads):
        # Static lane windows into the fused qkv scratch (torch feature order
        # along 3C is [3][H][D], so q_h / k_h / v_h live at h*D within each C).
        q = qkv_ref[:, h * d:(h + 1) * d] * scale               # (N, D)
        k = qkv_ref[:, c + h * d:c + (h + 1) * d]               # (N, D)
        v = qkv_ref[:, 2 * c + h * d:2 * c + (h + 1) * d]       # (N, D)

        # logits = (q * scale) @ k^T  -- contract over D, f32 accumulation.
        s = lax.dot_general(q, k, (((1,), (1,)), ((), ())),
                            preferred_element_type=jnp.float32)  # (N, N) f32

        if key_mask is not None:
            s = jnp.where(key_mask, s, -1e30)                    # mask pad keys

        # Numerically stable softmax; 1/sum folded into the (N, D) context.
        s_max = jnp.max(s, axis=-1, keepdims=True)
        p = jnp.exp(s - s_max)                                   # (N, N) f32
        denom = jnp.sum(p, axis=-1, keepdims=True)               # (N, 1)
        ctx = jnp.dot(p.astype(v.dtype), v,
                      preferred_element_type=jnp.float32)        # (N, D) f32
        ctx = ctx * pl.reciprocal(denom, approx=True)

        # Drop this head's context at lane offset h*D (no per-head projection).
        ctx_ref[:, h * d:(h + 1) * d] = ctx.astype(ctx_ref.dtype)

    # Single full-contraction output projection + bias, one lane-dense store.
    out = jnp.dot(ctx_ref[...], w_proj_ref[...],
                  preferred_element_type=jnp.float32)            # (N, C) f32
    out = out + b_ref[...].astype(jnp.float32)
    o_ref[...] = out.astype(o_ref.dtype)


def _vmem_limit_bytes(n_pad, c, dtype):
    """Rough VMEM budget: weights + pipelined activations + scratch + f32 tmps."""
    item = jnp.dtype(dtype).itemsize
    weights = (3 * c * c + c * c + c) * item * 2       # constant blocks (2 copies)
    acts = 2 * (n_pad * c) * item * 2                  # x + out blocks, 2-buffered
    scratch = (3 * n_pad * c + n_pad * c) * item       # qkv + ctx scratch
    f32_tmp = (n_pad * n_pad + 4 * n_pad * c) * 4      # logits / temporaries
    est = weights + acts + scratch + f32_tmp
    return int(min(128 * 1024 * 1024, max(32 * 1024 * 1024, 2 * est)))


def attention_forward(x, w_qkv, w_proj, b_proj, *, num_heads, seq_multiple=8):
    """x: (B, N, C); w_qkv: (C, 3C); w_proj: (C, C); b_proj: (1, C) or (C,).

    Weights are the nn.Linear weights stored transposed (in, out) so the
    kernel computes x @ W directly.  Use seq_multiple=128 (v5e) / 256 (v6e,
    v7x) for production sequence lengths.
    """
    B, N, C = x.shape
    assert C % num_heads == 0, "dim must be divisible by num_heads"
    D = C // num_heads
    scale = float(D) ** (-0.5)

    # Pad the sequence to a hardware-friendly length; padded key columns are
    # masked inside the kernel, padded query rows are sliced off below.
    n_pad = ((N + seq_multiple - 1) // seq_multiple) * seq_multiple
    x_p = x if n_pad == N else jnp.pad(x, ((0, 0), (0, n_pad - N), (0, 0)))

    b2 = jnp.reshape(b_proj, (1, C))

    kernel = functools.partial(attention_kernel, scale=scale,
                               num_heads=num_heads, head_dim=D, n_valid=N)

    out = pl.pallas_call(
        kernel,
        out_shape=jax.ShapeDtypeStruct((B, n_pad, C), x.dtype),
        grid_spec=pltpu.PrefetchScalarGridSpec(
            num_scalar_prefetch=0,
            grid=(B,),
            in_specs=[
                # x: one (N_pad, C) block per batch element.
                pl.BlockSpec((pl.Squeezed(), n_pad, C), lambda b: (b, 0, 0)),
                # weights/bias: constant index -> DMA'd once, VMEM-resident.
                pl.BlockSpec((C, 3 * C), lambda b: (0, 0)),
                pl.BlockSpec((C, C), lambda b: (0, 0)),
                pl.BlockSpec((1, C), lambda b: (0, 0)),
            ],
            out_specs=pl.BlockSpec((pl.Squeezed(), n_pad, C),
                                   lambda b: (b, 0, 0)),
            scratch_shapes=[
                pltpu.VMEM((n_pad, 3 * C), x.dtype),   # fused qkv activations
                pltpu.VMEM((n_pad, C), x.dtype),       # concatenated head ctx
            ],
        ),
        compiler_params=pltpu.CompilerParams(
            dimension_semantics=("parallel",),
            vmem_limit_bytes=_vmem_limit_bytes(n_pad, C, x.dtype)),
    )(x_p, w_qkv, w_proj, b2)

    return out if n_pad == N else out[:, :N, :]


def attention_reference(x, w_qkv, w_proj, b_proj, *, num_heads):
    """Pure-JAX reference mirroring the PyTorch forward."""
    B, N, C = x.shape
    D = C // num_heads
    scale = D ** (-0.5)
    qkv = x @ w_qkv                                   # (B, N, 3C)
    qkv = qkv.reshape(B, N, 3, num_heads, D).transpose(2, 0, 3, 1, 4)
    q, k, v = qkv[0], qkv[1], qkv[2]                  # (B, H, N, D)
    attn = (q @ jnp.swapaxes(k, -2, -1)) * scale      # (B, H, N, N)
    attn = jax.nn.softmax(attn, axis=-1)
    out = attn @ v                                    # (B, H, N, D)
    out = out.transpose(0, 2, 1, 3).reshape(B, N, C)
    return out @ w_proj + jnp.reshape(b_proj, (1, 1, C))


if __name__ == "__main__":
    key = jax.random.PRNGKey(0)
    kx, kqkv, kproj, kb, kx2 = jax.random.split(key, 5)

    # Config 1: aligned sequence, f32 (matches the PyTorch module defaults).
    B, N, C = 2, 8, 32
    num_heads = 8
    x = jax.random.normal(kx, (B, N, C), dtype=jnp.float32)
    w_qkv = 0.02 * jax.random.normal(kqkv, (C, 3 * C), dtype=jnp.float32)
    w_proj = 0.02 * jax.random.normal(kproj, (C, C), dtype=jnp.float32)
    b_proj = 0.02 * jax.random.normal(kb, (1, C), dtype=jnp.float32)

    out = attention_forward(x, w_qkv, w_proj, b_proj, num_heads=num_heads)
    out = jax.block_until_ready(out)
    ref = attention_reference(x, w_qkv, w_proj, b_proj, num_heads=num_heads)
    assert out.shape == (B, N, C)
    # approx reciprocal in the softmax epilogue -> slightly looser tolerance.
    assert jnp.allclose(out, ref, atol=2e-3, rtol=2e-3), "f32 mismatch vs ref"

    # Config 2: ragged sequence (exercises padding + key masking) with bf16
    # operands, i.e. the dtype the MXU actually wants on v6e/v7x.
    N2, H2 = 13, 4
    x2 = jax.random.normal(kx2, (B, N2, C), dtype=jnp.float32).astype(jnp.bfloat16)
    wq_bf = w_qkv.astype(jnp.bfloat16)
    wp_bf = w_proj.astype(jnp.bfloat16)
    bb_bf = b_proj.astype(jnp.bfloat16)

    out2 = attention_forward(x2, wq_bf, wp_bf, bb_bf, num_heads=H2)
    out2 = jax.block_until_ready(out2)
    ref2 = attention_reference(x2.astype(jnp.float32),
                               wq_bf.astype(jnp.float32),
                               wp_bf.astype(jnp.float32),
                               bb_bf.astype(jnp.float32), num_heads=H2)
    assert out2.shape == (B, N2, C)
    assert jnp.allclose(out2.astype(jnp.float32), ref2, atol=2e-2, rtol=2e-1), \
        "bf16 mismatch vs ref"

    print("KERNEL_OK")
</pallas_src>

<mosaic_0001>
module attributes {stable_mosaic.version = 11 : i64} {
  func.func @attention_kernel(%arg0: i32, %arg1: memref<1x8x32xf32, #tpu.memory_space<vmem>>, %arg2: memref<32x96xf32, #tpu.memory_space<vmem>>, %arg3: memref<32x32xf32, #tpu.memory_space<vmem>>, %arg4: memref<1x32xf32, #tpu.memory_space<vmem>>, %arg5: memref<1x8x32xf32, #tpu.memory_space<vmem>>, %arg6: memref<8x96xf32, #tpu.memory_space<vmem>>, %arg7: memref<8x32xf32, #tpu.memory_space<vmem>>) attributes {dimension_semantics = [#tpu.dimension_semantics<parallel>], iteration_bounds = array<i64: 2>, scalar_prefetch = 0 : i64, scratch_operands = 2 : i64, tpu.core_type = #tpu.core_type<tc>, window_params = [{transform_indices = @transform_0, window_bounds = array<i64: 1, 8, 32>}, {pipeline_mode = #tpu.pipeline_mode<synchronous>, transform_indices = @transform_1, window_bounds = array<i64: 32, 96>}, {pipeline_mode = #tpu.pipeline_mode<synchronous>, transform_indices = @transform_2, window_bounds = array<i64: 32, 32>}, {pipeline_mode = #tpu.pipeline_mode<synchronous>, transform_indices = @transform_3, window_bounds = array<i64: 1, 32>}, {transform_indices = @transform_4, window_bounds = array<i64: 1, 8, 32>}]} {
    %c0 = arith.constant 0 : index
    %c0_0 = arith.constant 0 : index
    %c0_1 = arith.constant 0 : index
    %0 = vector.load %arg1[%c0, %c0_0, %c0_1] : memref<1x8x32xf32, #tpu.memory_space<vmem>>, vector<1x8x32xf32>
    %1 = vector.shape_cast %0 : vector<1x8x32xf32> to vector<8x32xf32>
    %c0_2 = arith.constant 0 : index
    %c0_3 = arith.constant 0 : index
    %2 = vector.load %arg2[%c0_2, %c0_3] : memref<32x96xf32, #tpu.memory_space<vmem>>, vector<32x96xf32>
    %cst = arith.constant dense<0.000000e+00> : vector<8x96xf32>
    %3 = tpu.matmul %1, %2, %cst {dimension_numbers = #tpu.dot_dimension_numbers<[1], [0], [0], [1], [0, 0, 1, 1], [], []>} : vector<8x32xf32>, vector<32x96xf32>, vector<8x96xf32> -> vector<8x96xf32>
    %c0_4 = arith.constant 0 : index
    %c0_5 = arith.constant 0 : index
    %4 = vector.load %arg6[%c0_4, %c0_5] : memref<8x96xf32, #tpu.memory_space<vmem>>, vector<8x96xf32>
    tpu.vector_store %arg6[%c0_4, %c0_5], %3 {strides = array<i32>} : memref<8x96xf32, #tpu.memory_space<vmem>>, vector<8x96xf32>,
    %c0_6 = arith.constant 0 : index
    %c0_7 = arith.constant 0 : index
    %5 = vector.load %arg6[%c0_6, %c0_7] : memref<8x96xf32, #tpu.memory_space<vmem>>, vector<8x4xf32>
    %cst_8 = arith.constant 5.000000e-01 : f32
    %6 = vector.broadcast %cst_8 : f32 to vector<8x4xf32>
    %7 = arith.mulf %5, %6 : vector<8x4xf32>
    %c0_9 = arith.constant 0 : index
    %c32 = arith.constant 32 : index
    %8 = vector.load %arg6[%c0_9, %c32] : memref<8x96xf32, #tpu.memory_space<vmem>>, vector<8x4xf32>
    %c0_10 = arith.constant 0 : index
    %c64 = arith.constant 64 : index
    %9 = vector.load %arg6[%c0_10, %c64] : memref<8x96xf32, #tpu.memory_space<vmem>>, vector<8x4xf32>
    %cst_11 = arith.constant dense<0.000000e+00> : vector<8x8xf32>
    %10 = tpu.matmul %7, %8, %cst_11 {dimension_numbers = #tpu.dot_dimension_numbers<[1], [1], [0], [0], [0, 0, 1, 0], [], []>} : vector<8x4xf32>, vector<8x4xf32>, vector<8x8xf32> -> vector<8x8xf32>
    %cst_12 = arith.constant dense<0xFF800000> : vector<8xf32>
    %11 = vector.multi_reduction <maximumf>, %10, %cst_12 [1] : vector<8x8xf32> to vector<8xf32>
    %12 = vector.shape_cast %11 : vector<8xf32> to vector<8x1xf32>
    %13 = vector.broadcast %12 : vector<8x1xf32> to vector<8x8xf32>
    %14 = arith.subf %10, %13 : vector<8x8xf32>
    %15 = math.exp %14 : vector<8x8xf32>
    %cst_13 = arith.constant dense<0.000000e+00> : vector<8xf32>
    %16 = vector.multi_reduction <add>, %15, %cst_13 [1] : vector<8x8xf32> to vector<8xf32>
    %17 = vector.shape_cast %16 : vector<8xf32> to vector<8x1xf32>
    %cst_14 = arith.constant dense<0.000000e+00> : vector<8x4xf32>
    %18 = tpu.matmul %15, %9, %cst_14 {dimension_numbers = #tpu.dot_dimension_numbers<[1], [0], [0], [1], [0, 0, 1, 1], [], []>} : vector<8x8xf32>, vector<8x4xf32>, vector<8x4xf32> -> vector<8x4xf32>
    %19 = tpu.reciprocal %17 {approx = true} : vector<8x1xf32> -> vector<8x1xf32>
    %20 = vector.broadcast %19 : vector<8x1xf32> to vector<8x4xf32>
    %21 = arith.mulf %18, %20 : vector<8x4xf32>
    %c0_15 = arith.constant 0 : index
    %c0_16 = arith.constant 0 : index
    %22 = vector.load %arg7[%c0_15, %c0_16] : memref<8x32xf32, #tpu.memory_space<vmem>>, vector<8x4xf32>
    tpu.vector_store %arg7[%c0_15, %c0_16], %21 {strides = array<i32>} : memref<8x32xf32, #tpu.memory_space<vmem>>, vector<8x4xf32>,
    %c0_17 = arith.constant 0 : index
    %c4 = arith.constant 4 : index
    %23 = vector.load %arg6[%c0_17, %c4] : memref<8x96xf32, #tpu.memory_space<vmem>>, vector<8x4xf32>
    %cst_18 = arith.constant 5.000000e-01 : f32
    %24 = vector.broadcast %cst_18 : f32 to vector<8x4xf32>
    %25 = arith.mulf %23, %24 : vector<8x4xf32>
    %c0_19 = arith.constant 0 : index
    %c36 = arith.constant 36 : index
    %26 = vector.load %arg6[%c0_19, %c36] : memref<8x96xf32, #tpu.memory_space<vmem>>, vector<8x4xf32>
    %c0_20 = arith.constant 0 : index
    %c68 = arith.constant 68 : index
    %27 = vector.load %arg6[%c0_20, %c68] : memref<8x96xf32, #tpu.memory_space<vmem>>, vector<8x4xf32>
    %cst_21 = arith.constant dense<0.000000e+00> : vector<8x8xf32>
    %28 = tpu.matmul %25, %26, %cst_21 {dimension_numbers = #tpu.dot_dimension_numbers<[1], [1], [0], [0], [0, 0, 1, 0], [], []>} : vector<8x4xf32>, vector<8x4xf32>, vector<8x8xf32> -> vector<8x8xf32>
    %cst_22 = arith.constant dense<0xFF800000> : vector<8xf32>
    %29 = vector.multi_reduction <maximumf>, %28, %cst_22 [1] : vector<8x8xf32> to vector<8xf32>
    %30 = vector.shape_cast %29 : vector<8xf32> to vector<8x1xf32>
    %31 = vector.broadcast %30 : vector<8x1xf32> to vector<8x8xf32>
    %32 = arith.subf %28, %31 : vector<8x8xf32>
    %33 = math.exp %32 : vector<8x8xf32>
    %cst_23 = arith.constant dense<0.000000e+00> : vector<8xf32>
    %34 = vector.multi_reduction <add>, %33, %cst_23 [1] : vector<8x8xf32> to vector<8xf32>
    %35 = vector.shape_cast %34 : vector<8xf32> to vector<8x1xf32>
    %cst_24 = arith.constant dense<0.000000e+00> : vector<8x4xf32>
    %36 = tpu.matmul %33, %27, %cst_24 {dimension_numbers = #tpu.dot_dimension_numbers<[1], [0], [0], [1], [0, 0, 1, 1], [], []>} : vector<8x8xf32>, vector<8x4xf32>, vector<8x4xf32> -> vector<8x4xf32>
    %37 = tpu.reciprocal %35 {approx = true} : vector<8x1xf32> -> vector<8x1xf32>
    %38 = vector.broadcast %37 : vector<8x1xf32> to vector<8x4xf32>
    %39 = arith.mulf %36, %38 : vector<8x4xf32>
    %c0_25 = arith.constant 0 : index
    %c4_26 = arith.constant 4 : index
    %40 = vector.load %arg7[%c0_25, %c4_26] : memref<8x32xf32, #tpu.memory_space<vmem>>, vector<8x4xf32>
    tpu.vector_store %arg7[%c0_25, %c4_26], %39 {strides = array<i32>} : memref<8x32xf32, #tpu.memory_space<vmem>>, vector<8x4xf32>,
    %c0_27 = arith.constant 0 : index
    %c8 = arith.constant 8 : index
    %41 = vector.load %arg6[%c0_27, %c8] : memref<8x96xf32, #tpu.memory_space<vmem>>, vector<8x4xf32>
    %cst_28 = arith.constant 5.000000e-01 : f32
    %42 = vector.broadcast %cst_28 : f32 to vector<8x4xf32>
    %43 = arith.mulf %41, %42 : vector<8x4xf32>
    %c0_29 = arith.constant 0 : index
    %c40 = arith.constant 40 : index
    %44 = vector.load %arg6[%c0_29, %c40] : memref<8x96xf32, #tpu.memory_space<vmem>>, vector<8x4xf32>
    %c0_30 = arith.constant 0 : index
    %c72 = arith.constant 72 : index
    %45 = vector.load %arg6[%c0_30, %c72] : memref<8x96xf32, #tpu.memory_space<vmem>>, vector<8x4xf32>
    %cst_31 = arith.constant dense<0.000000e+00> : vector<8x8xf32>
    %46 = tpu.matmul %43, %44, %cst_31 {dimension_numbers = #tpu.dot_dimension_numbers<[1], [1], [0], [0], [0, 0, 1, 0], [], []>} : vector<8x4xf32>, vector<8x4xf32>, vector<8x8xf32> -> vector<8x8xf32>
    %cst_32 = arith.constant dense<0xFF800000> : vector<8xf32>
    %47 = vector.multi_reduction <maximumf>, %46, %cst_32 [1] : vector<8x8xf32> to vector<8xf32>
    %48 = vector.shape_cast %47 : vector<8xf32> to vector<8x1xf32>
    %49 = vector.broadcast %48 : vector<8x1xf32> to vector<8x8xf32>
    %50 = arith.subf %46, %49 : vector<8x8xf32>
    %51 = math.exp %50 : vector<8x8xf32>
    %cst_33 = arith.constant dense<0.000000e+00> : vector<8xf32>
    %52 = vector.multi_reduction <add>, %51, %cst_33 [1] : vector<8x8xf32> to vector<8xf32>
    %53 = vector.shape_cast %52 : vector<8xf32> to vector<8x1xf32>
    %cst_34 = arith.constant dense<0.000000e+00> : vector<8x4xf32>
    %54 = tpu.matmul %51, %45, %cst_34 {dimension_numbers = #tpu.dot_dimension_numbers<[1], [0], [0], [1], [0, 0, 1, 1], [], []>} : vector<8x8xf32>, vector<8x4xf32>, vector<8x4xf32> -> vector<8x4xf32>
    %55 = tpu.reciprocal %53 {approx = true} : vector<8x1xf32> -> vector<8x1xf32>
    %56 = vector.broadcast %55 : vector<8x1xf32> to vector<8x4xf32>
    %57 = arith.mulf %54, %56 : vector<8x4xf32>
    %c0_35 = arith.constant 0 : index
    %c8_36 = arith.constant 8 : index
    %58 = vector.load %arg7[%c0_35, %c8_36] : memref<8x32xf32, #tpu.memory_space<vmem>>, vector<8x4xf32>
    tpu.vector_store %arg7[%c0_35, %c8_36], %57 {strides = array<i32>} : memref<8x32xf32, #tpu.memory_space<vmem>>, vector<8x4xf32>,
    %c0_37 = arith.constant 0 : index
    %c12 = arith.constant 12 : index
    %59 = vector.load %arg6[%c0_37, %c12] : memref<8x96xf32, #tpu.memory_space<vmem>>, vector<8x4xf32>
    %cst_38 = arith.constant 5.000000e-01 : f32
    %60 = vector.broadcast %cst_38 : f32 to vector<8x4xf32>
    %61 = arith.mulf %59, %60 : vector<8x4xf32>
    %c0_39 = arith.constant 0 : index
    %c44 = arith.constant 44 : index
    %62 = vector.load %arg6[%c0_39, %c44] : memref<8x96xf32, #tpu.memory_space<vmem>>, vector<8x4xf32>
    %c0_40 = arith.constant 0 : index
    %c76 = arith.constant 76 : index
    %63 = vector.load %arg6[%c0_40, %c76] : memref<8x96xf32, #tpu.memory_space<vmem>>, vector<8x4xf32>
    %cst_41 = arith.constant dense<0.000000e+00> : vector<8x8xf32>
    %64 = tpu.matmul %61, %62, %cst_41 {dimension_numbers = #tpu.dot_dimension_numbers<[1], [1], [0], [0], [0, 0, 1, 0], [], []>} : vector<8x4xf32>, vector<8x4xf32>, vector<8x8xf32> -> vector<8x8xf32>
    %cst_42 = arith.constant dense<0xFF800000> : vector<8xf32>
    %65 = vector.multi_reduction <maximumf>, %64, %cst_42 [1] : vector<8x8xf32> to vector<8xf32>
    %66 = vector.shape_cast %65 : vector<8xf32> to vector<8x1xf32>
    %67 = vector.broadcast %66 : vector<8x1xf32> to vector<8x8xf32>
    %68 = arith.subf %64, %67 : vector<8x8xf32>
    %69 = math.exp %68 : vector<8x8xf32>
    %cst_43 = arith.constant dense<0.000000e+00> : vector<8xf32>
    %70 = vector.multi_reduction <add>, %69, %cst_43 [1] : vector<8x8xf32> to vector<8xf32>
    %71 = vector.shape_cast %70 : vector<8xf32> to vector<8x1xf32>
    %cst_44 = arith.constant dense<0.000000e+00> : vector<8x4xf32>
    %72 = tpu.matmul %69, %63, %cst_44 {dimension_numbers = #tpu.dot_dimension_numbers<[1], [0], [0], [1], [0, 0, 1, 1], [], []>} : vector<8x8xf32>, vector<8x4xf32>, vector<8x4xf32> -> vector<8x4xf32>
    %73 = tpu.reciprocal %71 {approx = true} : vector<8x1xf32> -> vector<8x1xf32>
    %74 = vector.broadcast %73 : vector<8x1xf32> to vector<8x4xf32>
    %75 = arith.mulf %72, %74 : vector<8x4xf32>
    %c0_45 = arith.constant 0 : index
    %c12_46 = arith.constant 12 : index
    %76 = vector.load %arg7[%c0_45, %c12_46] : memref<8x32xf32, #tpu.memory_space<vmem>>, vector<8x4xf32>
    tpu.vector_store %arg7[%c0_45, %c12_46], %75 {strides = array<i32>} : memref<8x32xf32, #tpu.memory_space<vmem>>, vector<8x4xf32>,
    %c0_47 = arith.constant 0 : index
    %c16 = arith.constant 16 : index
    %77 = vector.load %arg6[%c0_47, %c16] : memref<8x96xf32, #tpu.memory_space<vmem>>, vector<8x4xf32>
    %cst_48 = arith.constant 5.000000e-01 : f32
    %78 = vector.broadcast %cst_48 : f32 to vector<8x4xf32>
    %79 = arith.mulf %77, %78 : vector<8x4xf32>
    %c0_49 = arith.constant 0 : index
    %c48 = arith.constant 48 : index
    %80 = vector.load %arg6[%c0_49, %c48] : memref<8x96xf32, #tpu.memory_space<vmem>>, vector<8x4xf32>
    %c0_50 = arith.constant 0 : index
    %c80 = arith.constant 80 : index
    %81 = vector.load %arg6[%c0_50, %c80] : memref<8x96xf32, #tpu.memory_space<vmem>>, vector<8x4xf32>
    %cst_51 = arith.constant dense<0.000000e+00> : vector<8x8xf32>
    %82 = tpu.matmul %79, %80, %cst_51 {dimension_numbers = #tpu.dot_dimension_numbers<[1], [1], [0], [0], [0, 0, 1, 0], [], []>} : vector<8x4xf32>, vector<8x4xf32>, vector<8x8xf32> -> vector<8x8xf32>
    %cst_52 = arith.constant dense<0xFF800000> : vector<8xf32>
    %83 = vector.multi_reduction <maximumf>, %82, %cst_52 [1] : vector<8x8xf32> to vector<8xf32>
    %84 = vector.shape_cast %83 : vector<8xf32> to vector<8x1xf32>
    %85 = vector.broadcast %84 : vector<8x1xf32> to vector<8x8xf32>
    %86 = arith.subf %82, %85 : vector<8x8xf32>
    %87 = math.exp %86 : vector<8x8xf32>
    %cst_53 = arith.constant dense<0.000000e+00> : vector<8xf32>
    %88 = vector.multi_reduction <add>, %87, %cst_53 [1] : vector<8x8xf32> to vector<8xf32>
    %89 = vector.shape_cast %88 : vector<8xf32> to vector<8x1xf32>
    %cst_54 = arith.constant dense<0.000000e+00> : vector<8x4xf32>
    %90 = tpu.matmul %87, %81, %cst_54 {dimension_numbers = #tpu.dot_dimension_numbers<[1], [0], [0], [1], [0, 0, 1, 1], [], []>} : vector<8x8xf32>, vector<8x4xf32>, vector<8x4xf32> -> vector<8x4xf32>
    %91 = tpu.reciprocal %89 {approx = true} : vector<8x1xf32> -> vector<8x1xf32>
    %92 = vector.broadcast %91 : vector<8x1xf32> to vector<8x4xf32>
    %93 = arith.mulf %90, %92 : vector<8x4xf32>
    %c0_55 = arith.constant 0 : index
    %c16_56 = arith.constant 16 : index
    %94 = vector.load %arg7[%c0_55, %c16_56] : memref<8x32xf32, #tpu.memory_space<vmem>>, vector<8x4xf32>
    tpu.vector_store %arg7[%c0_55, %c16_56], %93 {strides = array<i32>} : memref<8x32xf32, #tpu.memory_space<vmem>>, vector<8x4xf32>,
    %c0_57 = arith.constant 0 : index
    %c20 = arith.constant 20 : index
    %95 = vector.load %arg6[%c0_57, %c20] : memref<8x96xf32, #tpu.memory_space<vmem>>, vector<8x4xf32>
    %cst_58 = arith.constant 5.000000e-01 : f32
    %96 = vector.broadcast %cst_58 : f32 to vector<8x4xf32>
    %97 = arith.mulf %95, %96 : vector<8x4xf32>
    %c0_59 = arith.constant 0 : index
    %c52 = arith.constant 52 : index
    %98 = vector.load %arg6[%c0_59, %c52] : memref<8x96xf32, #tpu.memory_space<vmem>>, vector<8x4xf32>
    %c0_60 = arith.constant 0 : index
    %c84 = arith.constant 84 : index
    %99 = vector.load %arg6[%c0_60, %c84] : memref<8x96xf32, #tpu.memory_space<vmem>>, vector<8x4xf32>
    %cst_61 = arith.constant dense<0.000000e+00> : vector<8x8xf32>
    %100 = tpu.matmul %97, %98, %cst_61 {dimension_numbers = #tpu.dot_dimension_numbers<[1], [1], [0], [0], [0, 0, 1, 0], [], []>} : vector<8x4xf32>, vector<8x4xf32>, vector<8x8xf32> -> vector<8x8xf32>
    %cst_62 = arith.constant dense<0xFF800000> : vector<8xf32>
    %101 = vector.multi_reduction <maximumf>, %100, %cst_62 [1] : vector<8x8xf32> to vector<8xf32>
    %102 = vector.shape_cast %101 : vector<8xf32> to vector<8x1xf32>
    %103 = vector.broadcast %102 : vector<8x1xf32> to vector<8x8xf32>
    %104 = arith.subf %100, %103 : vector<8x8xf32>
    %105 = math.exp %104 : vector<8x8xf32>
    %cst_63 = arith.constant dense<0.000000e+00> : vector<8xf32>
    %106 = vector.multi_reduction <add>, %105, %cst_63 [1] : vector<8x8xf32> to vector<8xf32>
    %107 = vector.shape_cast %106 : vector<8xf32> to vector<8x1xf32>
    %cst_64 = arith.constant dense<0.000000e+00> : vector<8x4xf32>
    %108 = tpu.matmul %105, %99, %cst_64 {dimension_numbers = #tpu.dot_dimension_numbers<[1], [0], [0], [1], [0, 0, 1, 1], [], []>} : vector<8x8xf32>, vector<8x4xf32>, vector<8x4xf32> -> vector<8x4xf32>
    %109 = tpu.reciprocal %107 {approx = true} : vector<8x1xf32> -> vector<8x1xf32>
    %110 = vector.broadcast %109 : vector<8x1xf32> to vector<8x4xf32>
    %111 = arith.mulf %108, %110 : vector<8x4xf32>
    %c0_65 = arith.constant 0 : index
    %c20_66 = arith.constant 20 : index
    %112 = vector.load %arg7[%c0_65, %c20_66] : memref<8x32xf32, #tpu.memory_space<vmem>>, vector<8x4xf32>
    tpu.vector_store %arg7[%c0_65, %c20_66], %111 {strides = array<i32>} : memref<8x32xf32, #tpu.memory_space<vmem>>, vector<8x4xf32>,
    %c0_67 = arith.constant 0 : index
    %c24 = arith.constant 24 : index
    %113 = vector.load %arg6[%c0_67, %c24] : memref<8x96xf32, #tpu.memory_space<vmem>>, vector<8x4xf32>
    %cst_68 = arith.constant 5.000000e-01 : f32
    %114 = vector.broadcast %cst_68 : f32 to vector<8x4xf32>
    %115 = arith.mulf %113, %114 : vector<8x4xf32>
    %c0_69 = arith.constant 0 : index
    %c56 = arith.constant 56 : index
    %116 = vector.load %arg6[%c0_69, %c56] : memref<8x96xf32, #tpu.memory_space<vmem>>, vector<8x4xf32>
    %c0_70 = arith.constant 0 : index
    %c88 = arith.constant 88 : index
    %117 = vector.load %arg6[%c0_70, %c88] : memref<8x96xf32, #tpu.memory_space<vmem>>, vector<8x4xf32>
    %cst_71 = arith.constant dense<0.000000e+00> : vector<8x8xf32>
    %118 = tpu.matmul %115, %116, %cst_71 {dimension_numbers = #tpu.dot_dimension_numbers<[1], [1], [0], [0], [0, 0, 1, 0], [], []>} : vector<8x4xf32>, vector<8x4xf32>, vector<8x8xf32> -> vector<8x8xf32>
    %cst_72 = arith.constant dense<0xFF800000> : vector<8xf32>
    %119 = vector.multi_reduction <maximumf>, %118, %cst_72 [1] : vector<8x8xf32> to vector<8xf32>
    %120 = vector.shape_cast %119 : vector<8xf32> to vector<8x1xf32>
    %121 = vector.broadcast %120 : vector<8x1xf32> to vector<8x8xf32>
    %122 = arith.subf %118, %121 : vector<8x8xf32>
    %123 = math.exp %122 : vector<8x8xf32>
    %cst_73 = arith.constant dense<0.000000e+00> : vector<8xf32>
    %124 = vector.multi_reduction <add>, %123, %cst_73 [1] : vector<8x8xf32> to vector<8xf32>
    %125 = vector.shape_cast %124 : vector<8xf32> to vector<8x1xf32>
    %cst_74 = arith.constant dense<0.000000e+00> : vector<8x4xf32>
    %126 = tpu.matmul %123, %117, %cst_74 {dimension_numbers = #tpu.dot_dimension_numbers<[1], [0], [0], [1], [0, 0, 1, 1], [], []>} : vector<8x8xf32>, vector<8x4xf32>, vector<8x4xf32> -> vector<8x4xf32>
    %127 = tpu.reciprocal %125 {approx = true} : vector<8x1xf32> -> vector<8x1xf32>
    %128 = vector.broadcast %127 : vector<8x1xf32> to vector<8x4xf32>
    %129 = arith.mulf %126, %128 : vector<8x4xf32>
    %c0_75 = arith.constant 0 : index
    %c24_76 = arith.constant 24 : index
    %130 = vector.load %arg7[%c0_75, %c24_76] : memref<8x32xf32, #tpu.memory_space<vmem>>, vector<8x4xf32>
    tpu.vector_store %arg7[%c0_75, %c24_76], %129 {strides = array<i32>} : memref<8x32xf32, #tpu.memory_space<vmem>>, vector<8x4xf32>,
    %c0_77 = arith.constant 0 : index
    %c28 = arith.constant 28 : index
    %131 = vector.load %arg6[%c0_77, %c28] : memref<8x96xf32, #tpu.memory_space<vmem>>, vector<8x4xf32>
    %cst_78 = arith.constant 5.000000e-01 : f32
    %132 = vector.broadcast %cst_78 : f32 to vector<8x4xf32>
    %133 = arith.mulf %131, %132 : vector<8x4xf32>
    %c0_79 = arith.constant 0 : index
    %c60 = arith.constant 60 : index
    %134 = vector.load %arg6[%c0_79, %c60] : memref<8x96xf32, #tpu.memory_space<vmem>>, vector<8x4xf32>
    %c0_80 = arith.constant 0 : index
    %c92 = arith.constant 92 : index
    %135 = vector.load %arg6[%c0_80, %c92] : memref<8x96xf32, #tpu.memory_space<vmem>>, vector<8x4xf32>
    %cst_81 = arith.constant dense<0.000000e+00> : vector<8x8xf32>
    %136 = tpu.matmul %133, %134, %cst_81 {dimension_numbers = #tpu.dot_dimension_numbers<[1], [1], [0], [0], [0, 0, 1, 0], [], []>} : vector<8x4xf32>, vector<8x4xf32>, vector<8x8xf32> -> vector<8x8xf32>
    %cst_82 = arith.constant dense<0xFF800000> : vector<8xf32>
    %137 = vector.multi_reduction <maximumf>, %136, %cst_82 [1] : vector<8x8xf32> to vector<8xf32>
    %138 = vector.shape_cast %137 : vector<8xf32> to vector<8x1xf32>
    %139 = vector.broadcast %138 : vector<8x1xf32> to vector<8x8xf32>
    %140 = arith.subf %136, %139 : vector<8x8xf32>
    %141 = math.exp %140 : vector<8x8xf32>
    %cst_83 = arith.constant dense<0.000000e+00> : vector<8xf32>
    %142 = vector.multi_reduction <add>, %141, %cst_83 [1] : vector<8x8xf32> to vector<8xf32>
    %143 = vector.shape_cast %142 : vector<8xf32> to vector<8x1xf32>
    %cst_84 = arith.constant dense<0.000000e+00> : vector<8x4xf32>
    %144 = tpu.matmul %141, %135, %cst_84 {dimension_numbers = #tpu.dot_dimension_numbers<[1], [0], [0], [1], [0, 0, 1, 1], [], []>} : vector<8x8xf32>, vector<8x4xf32>, vector<8x4xf32> -> vector<8x4xf32>
    %145 = tpu.reciprocal %143 {approx = true} : vector<8x1xf32> -> vector<8x1xf32>
    %146 = vector.broadcast %145 : vector<8x1xf32> to vector<8x4xf32>
    %147 = arith.mulf %144, %146 : vector<8x4xf32>
    %c0_85 = arith.constant 0 : index
    %c28_86 = arith.constant 28 : index
    %148 = vector.load %arg7[%c0_85, %c28_86] : memref<8x32xf32, #tpu.memory_space<vmem>>, vector<8x4xf32>
    tpu.vector_store %arg7[%c0_85, %c28_86], %147 {strides = array<i32>} : memref<8x32xf32, #tpu.memory_space<vmem>>, vector<8x4xf32>,
    %c0_87 = arith.constant 0 : index
    %c0_88 = arith.constant 0 : index
    %149 = vector.load %arg7[%c0_87, %c0_88] : memref<8x32xf32, #tpu.memory_space<vmem>>, vector<8x32xf32>
    %c0_89 = arith.constant 0 : index
    %c0_90 = arith.constant 0 : index
    %150 = vector.load %arg3[%c0_89, %c0_90] : memref<32x32xf32, #tpu.memory_space<vmem>>, vector<32x32xf32>
    %cst_91 = arith.constant dense<0.000000e+00> : vector<8x32xf32>
    %151 = tpu.matmul %149, %150, %cst_91 {dimension_numbers = #tpu.dot_dimension_numbers<[1], [0], [0], [1], [0, 0, 1, 1], [], []>} : vector<8x32xf32>, vector<32x32xf32>, vector<8x32xf32> -> vector<8x32xf32>
    %c0_92 = arith.constant 0 : index
    %c0_93 = arith.constant 0 : index
    %152 = vector.load %arg4[%c0_92, %c0_93] : memref<1x32xf32, #tpu.memory_space<vmem>>, vector<1x32xf32>
    %153 = vector.broadcast %152 : vector<1x32xf32> to vector<8x32xf32>
    %154 = arith.addf %151, %153 : vector<8x32xf32>
    %c0_94 = arith.constant 0 : index
    %c0_95 = arith.constant 0 : index
    %c0_96 = arith.constant 0 : index
    %155 = vector.load %arg5[%c0_94, %c0_95, %c0_96] : memref<1x8x32xf32, #tpu.memory_space<vmem>>, vector<1x8x32xf32>
    %156 = vector.shape_cast %155 : vector<1x8x32xf32> to vector<8x32xf32>
    %157 = vector.shape_cast %154 : vector<8x32xf32> to vector<1x8x32xf32>
    tpu.vector_store %arg5[%c0_94, %c0_95, %c0_96], %157 {strides = array<i32>} : memref<1x8x32xf32, #tpu.memory_space<vmem>>, vector<1x8x32xf32>,
    return
  }
  func.func @transform_0(%arg0: i32) -> (i32, i32, i32) {
    %c0_i32 = arith.constant 0 : i32
    %c0_i32_0 = arith.constant 0 : i32
    %c0_i32_1 = arith.constant 0 : i32
    return %arg0, %c0_i32, %c0_i32_0 : i32, i32, i32
  }
  func.func @transform_1(%arg0: i32) -> (i32, i32) {
    %c0_i32 = arith.constant 0 : i32
    %c0_i32_0 = arith.constant 0 : i32
    %c0_i32_1 = arith.constant 0 : i32
    return %c0_i32, %c0_i32_0 : i32, i32
  }
  func.func @transform_2(%arg0: i32) -> (i32, i32) {
    %c0_i32 = arith.constant 0 : i32
    %c0_i32_0 = arith.constant 0 : i32
    %c0_i32_1 = arith.constant 0 : i32
    return %c0_i32, %c0_i32_0 : i32, i32
  }
  func.func @transform_3(%arg0: i32) -> (i32, i32) {
    %c0_i32 = arith.constant 0 : i32
    %c0_i32_0 = arith.constant 0 : i32
    %c0_i32_1 = arith.constant 0 : i32
    return %c0_i32, %c0_i32_0 : i32, i32
  }
  func.func @transform_4(%arg0: i32) -> (i32, i32, i32) {
    %c0_i32 = arith.constant 0 : i32
    %c0_i32_0 = arith.constant 0 : i32
    %c0_i32_1 = arith.constant 0 : i32
    return %arg0, %c0_i32, %c0_i32_0 : i32, i32, i32
  }
}

</mosaic_0001>

<llo_original>
// kernel: tpu_custom_call.1
$region0: #{tpu_custom_call.1}
  #allocation0 [shape = 'u32[]', space=smem, size = 0x4, offset = 0x4, fixed_abs, tag = 'smem constant byte address 0x4 - core index']
  #allocation1 [shape = 'u32[144,128]{1,0:T(1,128)}', space=vmem, size = 0x12000, scoped, tag = 'internal scratch']
  #allocation2 [shape = 'f32[8,96]{1,0:T(8,128)}', space=vmem, size = 0x1000, scoped, tag = 'scratch operand']
  #allocation3 [shape = 'f32[8,32]{1,0:T(8,128)}', space=vmem, size = 0x1000, scoped, tag = 'scratch operand']
  %s0 = inlined_call_operand.hbm [shape: f32[2,8,32], index: 0, kind: input, shape index: {}]
  %s1 = inlined_call_operand.hbm [shape: f32[32,96], index: 1, kind: input, shape index: {}]
  %s2 = inlined_call_operand.hbm [shape: f32[32,32], index: 2, kind: input, shape index: {}]
  %s3 = inlined_call_operand.vmem [shape: f32[1,32], index: 3, kind: input, shape index: {}]
  %s4 = inlined_call_operand.hbm [shape: f32[2,8,32], index: 4, kind: output, shape index: {}]
  %s5 = sld [smem:[#allocation0]]
  $region61: #{tpu_custom_call.1} parent=0
    _
  %s7 = ssub.s32 1, %s5
  %s8 = scalar_select 0, %s7, %s5
  $region1: #{tpu_custom_call.1} parent=0
    #allocation4 [shape = 'u8[8192]{0}', space=vmem, size = 0x2000, scoped, tag = 'input window, operand 0']
    #allocation5 [shape = 's32[2]{0}', space=sflag, size = 0x8, scoped, tag = 'scoped memory for tpu_custom_call.1']
    #allocation6 [shape = 's32[2]{0}', space=sflag, size = 0x8, scoped, tag = 'scoped memory for tpu_custom_call.1']
    #allocation7 [shape = 'u8[16384]{0}', space=vmem, size = 0x4000, scoped, tag = 'input window, operand 1, single buffered']
    #allocation8 [shape = 's32[1]{0}', space=sflag, size = 0x4, scoped, tag = 'scoped memory for tpu_custom_call.1']
    #allocation9 [shape = 'u8[16384]{0}', space=vmem, size = 0x4000, scoped, tag = 'input window, operand 2, single buffered']
    #allocation10 [shape = 'u8[8192]{0}', space=vmem, size = 0x2000, scoped, tag = 'output window, operand 0']
    %9 = vsyncpa [#allocation5], 0
    %s10 = scalar_lea.sflag [#allocation5], 1
    %11 = vsyncpa %s10, 0
    %12 = vsyncpa [#allocation8], 0
    %13 = vsyncpa [#allocation6], 0
    %s14 = scalar_lea.sflag [#allocation6], 1
    %15 = vsyncpa %s14, 0
    loop: start=0, step=1, limit=4
    $region2: #{tpu_custom_call.1} parent=1 // loop_pre_header
      _
    $region3: #{tpu_custom_call.1} parent=1 // loop_header
      %s17 = sphi 0, %s21
      %p18 = scmp.ge.s32.totalorder %s17, 4
      %s27 = sphi 0, %s29
      %s30 = sphi 0, %s27
      %s31 = sphi 0, %s30
      %s47 = sphi 0, %s31
      %s51 = sphi 0, %s51
      %s53 = sphi 0, %s51
      %s54 = sphi 0, %s53
      %s68 = sphi 0, %s54
      %s72 = sphi 0, %s72
      %s74 = sphi 0, %s72
      %s75 = sphi 0, %s74
      %s89 = sphi 0, %s75
      %s93 = sphi 0, %s93
      %s95 = sphi 0, %s93
      %s96 = sphi 0, %s95
      %s110 = sphi 0, %s96
      %s116 = sphi 0, %s118
      %s119 = sphi 0, %s116
      %s120 = sphi 0, %s119
      %s136 = sphi 0, %s120
    $region4: #{tpu_custom_call.1} parent=1 // loop_header_branch
      %20 = sbr.rel (%p18) target = $region8
    $region5: #{tpu_custom_call.1} parent=1 // loop_body
      %s22 = ssub.s32 %s17, 1
      %s23 = ssub.s32 %s17, 2
      %s24 = sadd.s32 %s17, 1
      %s25 = ssub.s32 %s17, %s24
      %p26 = scmp.eq.s32.totalorder %s25, 0
      %s28 = sadd.s32 %s27, 1
      %s29 = scalar_select %p26, %s27, %s28
      %p32 = pneg %p26
      %p33 = scmp.eq.s32.totalorder %s17, 1
      %p34 = por %p32, %p33
      %p35 = scmp.ne.s32.totalorder %s27, %s30
      %p36 = scmp.eq.s32.totalorder %s17, 0
      %p37 = por %p35, %p36
      %p38 = scmp.ne.s32.totalorder %s27, %s30
      %p39 = scmp.eq.s32.totalorder %s22, 1
      %p40 = por %p38, %p39
      %p41 = scmp.ne.s32.totalorder %s30, %s31
      %p42 = scmp.eq.s32.totalorder %s22, 0
      %p43 = por %p41, %p42
      %p44 = scmp.ne.s32.totalorder %s30, %s31
      %p45 = scmp.eq.s32.totalorder %s23, 1
      %p46 = por %p44, %p45
      %p48 = scmp.ne.s32.totalorder %s31, %s47
      %p49 = scmp.eq.s32.totalorder %s23, 0
      %p50 = por %p48, %p49
      %s52 = sadd.s32 %s51, 1
      %p55 = scmp.eq.s32.totalorder %s17, 1
      %p56 = scmp.ne.s32.totalorder %s51, %s53
      %p57 = scmp.eq.s32.totalorder %s17, 0
      %p58 = por %p56, %p57
      %p59 = scmp.ne.s32.totalorder %s51, %s53
      %p60 = scmp.eq.s32.totalorder %s22, 1
      %p61 = por %p59, %p60
      %p62 = scmp.ne.s32.totalorder %s53, %s54
      %p63 = scmp.eq.s32.totalorder %s22, 0
      %p64 = por %p62, %p63
      %p65 = scmp.ne.s32.totalorder %s53, %s54
      %p66 = scmp.eq.s32.totalorder %s23, 1
      %p67 = por %p65, %p66
      %p69 = scmp.ne.s32.totalorder %s54, %s68
      %p70 = scmp.eq.s32.totalorder %s23, 0
      %p71 = por %p69, %p70
      %s73 = sadd.s32 %s72, 1
      %p76 = scmp.eq.s32.totalorder %s17, 1
      %p77 = scmp.ne.s32.totalorder %s72, %s74
      %p78 = scmp.eq.s32.totalorder %s17, 0
      %p79 = por %p77, %p78
      %p80 = scmp.ne.s32.totalorder %s72, %s74
      %p81 = scmp.eq.s32.totalorder %s22, 1
      %p82 = por %p80, %p81
      %p83 = scmp.ne.s32.totalorder %s74, %s75
      %p84 = scmp.eq.s32.totalorder %s22, 0
      %p85 = por %p83, %p84
      %p86 = scmp.ne.s32.totalorder %s74, %s75
      %p87 = scmp.eq.s32.totalorder %s23, 1
      %p88 = por %p86, %p87
      %p90 = scmp.ne.s32.totalorder %s75, %s89
      %p91 = scmp.eq.s32.totalorder %s23, 0
      %p92 = por %p90, %p91
      %s94 = sadd.s32 %s93, 1
      %p97 = scmp.eq.s32.totalorder %s17, 1
      %p98 = scmp.ne.s32.totalorder %s93, %s95
      %p99 = scmp.eq.s32.totalorder %s17, 0
      %p100 = por %p98, %p99
      %p101 = scmp.ne.s32.totalorder %s93, %s95
      %p102 = scmp.eq.s32.totalorder %s22, 1
      %p103 = por %p101, %p102
      %p104 = scmp.ne.s32.totalorder %s95, %s96
      %p105 = scmp.eq.s32.totalorder %s22, 0
      %p106 = por %p104, %p105
      %p107 = scmp.ne.s32.totalorder %s95, %s96
      %p108 = scmp.eq.s32.totalorder %s23, 1
      %p109 = por %p107, %p108
      %p111 = scmp.ne.s32.totalorder %s96, %s110
      %p112 = scmp.eq.s32.totalorder %s23, 0
      %p113 = por %p111, %p112
      %s114 = ssub.s32 %s17, %s24
      %p115 = scmp.eq.s32.totalorder %s114, 0
      %s117 = sadd.s32 %s116, 1
      %s118 = scalar_select %p115, %s116, %s117
      %p121 = pneg %p115
      %p122 = scmp.eq.s32.totalorder %s17, 1
      %p123 = por %p121, %p122
      %p124 = scmp.ne.s32.totalorder %s116, %s119
      %p125 = scmp.eq.s32.totalorder %s17, 0
      %p126 = por %p124, %p125
      %p127 = scmp.ne.s32.totalorder %s116, %s119
      %p128 = scmp.eq.s32.totalorder %s22, 1
      %p129 = por %p127, %p128
      %p130 = scmp.ne.s32.totalorder %s119, %s120
      %p131 = scmp.eq.s32.totalorder %s22, 0
      %p132 = por %p130, %p131
      %p133 = scmp.ne.s32.totalorder %s119, %s120
      %p134 = scmp.eq.s32.totalorder %s23, 1
      %p135 = por %p133, %p134
      %p137 = scmp.ne.s32.totalorder %s120, %s136
      %p138 = scmp.eq.s32.totalorder %s23, 0
      %p139 = por %p137, %p138
      %p140 = scmp.le.s32.totalorder 1, %s17
      %p141 = scmp.lt.s32.totalorder %s17, 3
      %p142 = pnand %p140, %p141
      %p143 = pneg %p142
      // Predicated region
      $region9: #{tpu_custom_call.1} parent=5 // pred_check
        _
      $region10: #{tpu_custom_call.1} parent=5 // pred_check_branch
        %145 = sbr.rel (%p142) target = $region12
      $region11: #{tpu_custom_call.1} parent=5 // pred_region
        %s146 = ssub.s32 %s17, 1
        // Predicated region
        $region13: #{tpu_custom_call.1} parent=11 // pred_check
          %p147 = pneg %p64
        $region14: #{tpu_custom_call.1} parent=11 // pred_check_branch
          %149 = sbr.rel (%p147) target = $region16
        $region15: #{tpu_custom_call.1} parent=11 // pred_region
          %s151 = ssub.s32 512, 512
          %152 = vsyncadd [#allocation8], %s151
          %s153 = sshll.u32 [#allocation7], 4
          %s154 = int_to_ptr.vmem [resolvable:$true] %s153
          %159 = dma.hbm_to_vmem [thread:$0]  %s1, 512, %s154, [#allocation8], 128, 128, 8
        $region16: #{tpu_custom_call.1} parent=11 // pred_fallthru
          _
        // Predicated region
        $region17: #{tpu_custom_call.1} parent=11 // pred_check
          %p160 = pneg %p85
        $region18: #{tpu_custom_call.1} parent=11 // pred_check_branch
          %162 = sbr.rel (%p160) target = $region20
        $region19: #{tpu_custom_call.1} parent=11 // pred_region
          %s164 = ssub.s32 512, 512
          %165 = vsyncadd [#allocation8], %s164
          %s166 = sshll.u32 [#allocation9], 4
          %s167 = int_to_ptr.vmem [resolvable:$true] %s166
          %172 = dma.hbm_to_vmem [thread:$0]  %s2, 512, %s167, [#allocation8], 128, 128, 8
        $region20: #{tpu_custom_call.1} parent=11 // pred_fallthru
          _
        // Predicated region
        $region21: #{tpu_custom_call.1} parent=11 // pred_check
          %p173 = pneg %p106
        $region22: #{tpu_custom_call.1} parent=11 // pred_check_branch
          %175 = sbr.rel (%p173) target = $region24
        $region23: #{tpu_custom_call.1} parent=11 // pred_region
          _
        $region24: #{tpu_custom_call.1} parent=11 // pred_fallthru
          _
      $region12: #{tpu_custom_call.1} parent=5 // pred_fallthru
        _
      %p176 = scmp.lt.s32.totalorder %s17, 2
      // Predicated region
      $region25: #{tpu_custom_call.1} parent=5 // pred_check
        %p177 = pneg %p176
      $region26: #{tpu_custom_call.1} parent=5 // pred_check_branch
        %179 = sbr.rel (%p177) target = $region28
      $region27: #{tpu_custom_call.1} parent=5 // pred_region
        // Predicated region
        $region29: #{tpu_custom_call.1} parent=27 // pred_check
          %p180 = pneg %p37
        $region30: #{tpu_custom_call.1} parent=27 // pred_check_branch
          %182 = sbr.rel (%p180) target = $region32
        $region31: #{tpu_custom_call.1} parent=27 // pred_region
          %s183 = sand.u32 %s27, 1
          %s184 = scalar_lea.sflag [#allocation5], %s183
          %s185 = sand.u32 %s27, 1
          %s186 = smul.addr %s185, 8
          %s187 = scalar_lea.vmem [#allocation4], %s186
          %s189 = ssub.s32 128, 128
          %190 = vsyncadd %s184, %s189
          %s191 = smul.addr %s17, 128
          %s192 = scalar_lea.hbm %s0, %s191
          %s194 = sshll.u32 %s187, 4
          %s195 = int_to_ptr.vmem [resolvable:$true] %s194
          %197 = dma.hbm_to_vmem [thread:$0]  %s192, 128, %s195, %s184
        $region32: #{tpu_custom_call.1} parent=27 // pred_fallthru
          _
      $region28: #{tpu_custom_call.1} parent=5 // pred_fallthru
        _
      %p198 = scmp.le.s32.totalorder 1, %s17
      %p199 = scmp.lt.s32.totalorder %s17, 3
      %p200 = pnand %p198, %p199
      %p201 = pneg %p200
      // Predicated region
      $region33: #{tpu_custom_call.1} parent=5 // pred_check
        _
      $region34: #{tpu_custom_call.1} parent=5 // pred_check_branch
        %203 = sbr.rel (%p200) target = $region36
      $region35: #{tpu_custom_call.1} parent=5 // pred_region
        %s204 = ssub.s32 %s17, 1
        %s205 = sand.u32 %s30, 1
        %s206 = scalar_lea.sflag [#allocation5], %s205
        %s207 = sand.u32 %s30, 1
        %s208 = smul.addr %s207, 8
        %s209 = scalar_lea.vmem [#allocation4], %s208
        // Predicated region
        $region37: #{tpu_custom_call.1} parent=35 // pred_check
          %p210 = pneg %p43
        $region38: #{tpu_custom_call.1} parent=35 // pred_check_branch
          %212 = sbr.rel (%p210) target = $region40
        $region39: #{tpu_custom_call.1} parent=35 // pred_region
          %213 = dma.done %s206, 128
        $region40: #{tpu_custom_call.1} parent=35 // pred_fallthru
          _
        // Predicated region
        $region41: #{tpu_custom_call.1} parent=35 // pred_check
          %p214 = pneg %p64
        $region42: #{tpu_custom_call.1} parent=35 // pred_check_branch
          %216 = sbr.rel (%p214) target = $region44
        $region43: #{tpu_custom_call.1} parent=35 // pred_region
          %217 = dma.done [#allocation8], 512
        $region44: #{tpu_custom_call.1} parent=35 // pred_fallthru
          _
        // Predicated region
        $region45: #{tpu_custom_call.1} parent=35 // pred_check
          %p218 = pneg %p85
        $region46: #{tpu_custom_call.1} parent=35 // pred_check_branch
          %220 = sbr.rel (%p218) target = $region48
        $region47: #{tpu_custom_call.1} parent=35 // pred_region
          %221 = dma.done [#allocation8], 512
        $region48: #{tpu_custom_call.1} parent=35 // pred_fallthru
          _
        %s222 = sand.u32 %s30, 1
        %s223 = scalar_lea.sflag [#allocation5], %s222
        %s224 = sand.u32 %s30, 1
        %s225 = smul.addr %s224, 8
        %s226 = scalar_lea.vmem [#allocation4], %s225
        %p227 = pneg %p43
        %p228 = pneg %p40
        %p229 = pneg %p64
        %p230 = pneg %p61
        %p231 = pneg %p85
        %p232 = pneg %p82
        %p233 = pneg %p106
        %p234 = pneg %p103
        %p235 = pneg %p132
        %p236 = pneg %p129
        %s237 = sand.u32 %s119, 1
        %s238 = scalar_lea.sflag [#allocation6], %s237
        %s239 = sand.u32 %s119, 1
        %s240 = smul.addr %s239, 8
        %s241 = scalar_lea.vmem [#allocation10], %s240
        %v242 = vld [vmem:[%s209] sm:$0xff]
        %v243 = vld [vmem:[#allocation7] sm:$0xff]
        %v244 = vld [vmem:[#allocation7 + $0x8] sm:$0xff]
        %v245 = vld [vmem:[#allocation7 + $0x10] sm:$0xff]
        %v246 = vld [vmem:[#allocation7 + $0x18] sm:$0xff]
        %vm247 = vcmask 261120
        %v249 = vsel %vm247, %v242, 0
        %251 = vmatprep.subr.mxu0 0.0
        %252 = vmatpush1.msra.mxu0 0.0
        %253 = vmatprep.subr.mxu0 0.0
        %254 = vmatpush1.msra.mxu0 0.0
        %255 = vmatprep.subr.mxu0 0.0
        %256 = vmatpush1.msra.mxu0 0.0
        %257 = vmatprep.subr.mxu0 0.0
        %258 = vmatpush1.msra.mxu0 0.0
        %259 = vmatprep.subr.mxu0 0.0
        %260 = vmatpush1.msra.mxu0 0.0
        %261 = vmatprep.subr.mxu0 0.0
        %262 = vmatpush1.msra.mxu0 0.0
        %263 = vmatprep.subr.mxu0 0.0
        %264 = vmatpush1.msra.mxu0 0.0
        %265 = vmatprep.subr.mxu0 0.0
        %266 = vmatpush1.msra.mxu0 0.0
        %267 = vmatprep.subr.mxu0 0.0
        %268 = vmatpush1.msra.mxu0 0.0
        %269 = vmatprep.subr.mxu0 0.0
        %270 = vmatpush1.msra.mxu0 0.0
        %271 = vmatprep.subr.mxu0 0.0
        %272 = vmatpush1.msra.mxu0 0.0
        %273 = vmatprep.subr.mxu0 0.0
        %274 = vmatpush1.msra.mxu0 0.0
        %275 = vmatprep.subr.mxu0 0.0
        %276 = vmatpush1.msra.mxu0 %v246
        %277 = vmatprep.subr.mxu0 0.0
        %278 = vmatpush1.msra.mxu0 %v245
        %279 = vmatprep.subr.mxu0 0.0
        %280 = vmatpush1.msra.mxu0 %v244
        %281 = vmatprep.subr.mxu0 0.0
        %282 = vmatpush1.msra.mxu0 %v243
        %283 = vmatprep.subr.mxu0 0.0
        %284 = vmatpush2.msra.mxu0 0.0
        %285 = vmatprep.subr.mxu0 0.0
        %286 = vmatpush2.msra.mxu0 0.0
        %287 = vmatprep.subr.mxu0 0.0
        %288 = vmatpush2.msra.mxu0 0.0
        %289 = vmatprep.subr.mxu0 0.0
        %290 = vmatpush2.msra.mxu0 0.0
        %291 = vmatprep.subr.mxu0 0.0
        %292 = vmatpush2.msra.mxu0 0.0
        %293 = vmatprep.subr.mxu0 0.0
        %294 = vmatpush2.msra.mxu0 0.0
        %295 = vmatprep.subr.mxu0 0.0
        %296 = vmatpush2.msra.mxu0 0.0
        %297 = vmatprep.subr.mxu0 0.0
        %298 = vmatpush2.msra.mxu0 0.0
        %299 = vmatprep.subr.mxu0 0.0
        %300 = vmatpush2.msra.mxu0 0.0
        %301 = vmatprep.subr.mxu0 0.0
        %302 = vmatpush2.msra.mxu0 0.0
        %303 = vmatprep.subr.mxu0 0.0
        %304 = vmatpush2.msra.mxu0 0.0
        %305 = vmatprep.subr.mxu0 0.0
        %306 = vmatpush2.msra.mxu0 0.0
        %307 = vmatprep.subr.mxu0 0.0
        %308 = vmatpush2.msra.mxu0 0.0
        %309 = vmatprep.subr.mxu0 0.0
        %310 = vmatpush2.msra.mxu0 0.0
        %311 = vmatprep.subr.mxu0 0.0
        %312 = vmatpush2.msra.mxu0 0.0
        %313 = vmatprep.subr.mxu0 0.0
        %314 = vmatpush2.msra.mxu0 0.0
        %315 = vmatprep.mubr.f32.mxu0 0.0
        %316 = vmatmul.mubr.f32.gmra.mxu0 %v249
        %v317 = vpop.f32.mrf.mxu0
        %v318 = vadd.f32 0.0, %v317
        %v319 = vpop.f32.mrf.mxu0
        %320 = vdwg.mxu0
        %vm321 = vcmask 785408
        %322 = vst.msk [vmem:[#allocation2] sm:$0xff] %vm321, %v318
        %v323 = vld [vmem:[#allocation2] sm:$0xff]
        %v324 = vmul.f32 %v323, 0.5
        %326 = vrot.lane.b32.xlu0 %v323, 96
        %v327 = vpop.permute.xlu0 %326
        %vm328 = vcmask 31744
        %v330 = vsel %vm328, %v324, 0
        %v332 = vsel %vm328, %v327, 0
        %334 = vmatprep.subr.mxu0 0.0
        %335 = vmatpush1.xpose.msra.mxu0 0.0
        %336 = vmatprep.subr.mxu0 0.0
        %337 = vmatpush1.xpose.msra.mxu0 0.0
        %338 = vmatprep.subr.mxu0 0.0
        %339 = vmatpush1.xpose.msra.mxu0 0.0
        %340 = vmatprep.subr.mxu0 0.0
        %341 = vmatpush1.xpose.msra.mxu0 0.0
        %342 = vmatprep.subr.mxu0 0.0
        %343 = vmatpush1.xpose.msra.mxu0 0.0
        %344 = vmatprep.subr.mxu0 0.0
        %345 = vmatpush1.xpose.msra.mxu0 0.0
        %346 = vmatprep.subr.mxu0 0.0
        %347 = vmatpush1.xpose.msra.mxu0 0.0
        %348 = vmatprep.subr.mxu0 0.0
        %349 = vmatpush1.xpose.msra.mxu0 0.0
        %350 = vmatprep.subr.mxu0 0.0
        %351 = vmatpush1.xpose.msra.mxu0 0.0
        %352 = vmatprep.subr.mxu0 0.0
        %353 = vmatpush1.xpose.msra.mxu0 0.0
        %354 = vmatprep.subr.mxu0 0.0
        %355 = vmatpush1.xpose.msra.mxu0 0.0
        %356 = vmatprep.subr.mxu0 0.0
        %357 = vmatpush1.xpose.msra.mxu0 0.0
        %358 = vmatprep.subr.mxu0 0.0
        %359 = vmatpush1.xpose.msra.mxu0 0.0
        %360 = vmatprep.subr.mxu0 0.0
        %361 = vmatpush1.xpose.msra.mxu0 0.0
        %362 = vmatprep.subr.mxu0 0.0
        %363 = vmatpush1.xpose.msra.mxu0 0.0
        %364 = vmatprep.subr.mxu0 0.0
        %365 = vmatpush1.xpose.msra.mxu0 %v332
        %366 = vmatprep.subr.mxu0 0.0
        %367 = vmatpush2.xpose.msra.mxu0 0.0
        %368 = vmatprep.subr.mxu0 0.0
        %369 = vmatpush2.xpose.msra.mxu0 0.0
        %370 = vmatprep.subr.mxu0 0.0
        %371 = vmatpush2.xpose.msra.mxu0 0.0
        %372 = vmatprep.subr.mxu0 0.0
        %373 = vmatpush2.xpose.msra.mxu0 0.0
        %374 = vmatprep.subr.mxu0 0.0
        %375 = vmatpush2.xpose.msra.mxu0 0.0
        %376 = vmatprep.subr.mxu0 0.0
        %377 = vmatpush2.xpose.msra.mxu0 0.0
        %378 = vmatprep.subr.mxu0 0.0
        %379 = vmatpush2.xpose.msra.mxu0 0.0
        %380 = vmatprep.subr.mxu0 0.0
        %381 = vmatpush2.xpose.msra.mxu0 0.0
        %382 = vmatprep.subr.mxu0 0.0
        %383 = vmatpush2.xpose.msra.mxu0 0.0
        %384 = vmatprep.subr.mxu0 0.0
        %385 = vmatpush2.xpose.msra.mxu0 0.0
        %386 = vmatprep.subr.mxu0 0.0
        %387 = vmatpush2.xpose.msra.mxu0 0.0
        %388 = vmatprep.subr.mxu0 0.0
        %389 = vmatpush2.xpose.msra.mxu0 0.0
        %390 = vmatprep.subr.mxu0 0.0
        %391 = vmatpush2.xpose.msra.mxu0 0.0
        %392 = vmatprep.subr.mxu0 0.0
        %393 = vmatpush2.xpose.msra.mxu0 0.0
        %394 = vmatprep.subr.mxu0 0.0
        %395 = vmatpush2.xpose.msra.mxu0 0.0
        %396 = vmatprep.subr.mxu0 0.0
        %397 = vmatpush2.xpose.msra.mxu0 0.0
        %398 = vmatprep.mubr.f32.mxu0 0.0
        %399 = vmatmul.mubr.f32.gmra.mxu0 %v330
        %v400 = vpop.f32.mrf.mxu0
        %v401 = vadd.f32 0.0, %v400
        %v402 = vpop.f32.mrf.mxu0
        %403 = vdwg.mxu0
        %vm404 = vcmask 64512
        %v405 = vsel %vm404, %v401, -inf
        %406 = vmax.xlane.f32.xlu0 %v405
        %v407 = vpop.xlane.xlu0 %406
        %v408 = vsub.f32 %v401, %v407
        %v409 = vmul.f32 %v408, 1.442695
        %v410 = vpow.pop %v409
        %v411 = vsel %vm404, %v410, 0.0
        %412 = vadd.xlane.f32.xlu0 %v411
        %v413 = vpop.xlane.xlu0 %412
        %414 = vrot.lane.b32.xlu0 %v323, 64
        %v415 = vpop.permute.xlu0 %414
        %v418 = vsel %vm404, %v410, 0
        %420 = vmatprep.subr.mxu0 0.0
        %421 = vmatpush1.msra.mxu0 0.0
        %422 = vmatprep.subr.mxu0 0.0
        %423 = vmatpush1.msra.mxu0 0.0
        %424 = vmatprep.subr.mxu0 0.0
        %425 = vmatpush1.msra.mxu0 0.0
        %426 = vmatprep.subr.mxu0 0.0
        %427 = vmatpush1.msra.mxu0 0.0
        %428 = vmatprep.subr.mxu0 0.0
        %429 = vmatpush1.msra.mxu0 0.0
        %430 = vmatprep.subr.mxu0 0.0
        %431 = vmatpush1.msra.mxu0 0.0
        %432 = vmatprep.subr.mxu0 0.0
        %433 = vmatpush1.msra.mxu0 0.0
        %434 = vmatprep.subr.mxu0 0.0
        %435 = vmatpush1.msra.mxu0 0.0
        %436 = vmatprep.subr.mxu0 0.0
        %437 = vmatpush1.msra.mxu0 0.0
        %438 = vmatprep.subr.mxu0 0.0
        %439 = vmatpush1.msra.mxu0 0.0
        %440 = vmatprep.subr.mxu0 0.0
        %441 = vmatpush1.msra.mxu0 0.0
        %442 = vmatprep.subr.mxu0 0.0
        %443 = vmatpush1.msra.mxu0 0.0
        %444 = vmatprep.subr.mxu0 0.0
        %445 = vmatpush1.msra.mxu0 0.0
        %446 = vmatprep.subr.mxu0 0.0
        %447 = vmatpush1.msra.mxu0 0.0
        %448 = vmatprep.subr.mxu0 0.0
        %449 = vmatpush1.msra.mxu0 0.0
        %450 = vmatprep.subr.mxu0 0.0
        %451 = vmatpush1.msra.mxu0 %v415
        %452 = vmatprep.subr.mxu0 0.0
        %453 = vmatpush2.msra.mxu0 0.0
        %454 = vmatprep.subr.mxu0 0.0
        %455 = vmatpush2.msra.mxu0 0.0
        %456 = vmatprep.subr.mxu0 0.0
        %457 = vmatpush2.msra.mxu0 0.0
        %458 = vmatprep.subr.mxu0 0.0
        %459 = vmatpush2.msra.mxu0 0.0
        %460 = vmatprep.subr.mxu0 0.0
        %461 = vmatpush2.msra.mxu0 0.0
        %462 = vmatprep.subr.mxu0 0.0
        %463 = vmatpush2.msra.mxu0 0.0
        %464 = vmatprep.subr.mxu0 0.0
        %465 = vmatpush2.msra.mxu0 0.0
        %466 = vmatprep.subr.mxu0 0.0
        %467 = vmatpush2.msra.mxu0 0.0
        %468 = vmatprep.subr.mxu0 0.0
        %469 = vmatpush2.msra.mxu0 0.0
        %470 = vmatprep.subr.mxu0 0.0
        %471 = vmatpush2.msra.mxu0 0.0
        %472 = vmatprep.subr.mxu0 0.0
        %473 = vmatpush2.msra.mxu0 0.0
        %474 = vmatprep.subr.mxu0 0.0
        %475 = vmatpush2.msra.mxu0 0.0
        %476 = vmatprep.subr.mxu0 0.0
        %477 = vmatpush2.msra.mxu0 0.0
        %478 = vmatprep.subr.mxu0 0.0
        %479 = vmatpush2.msra.mxu0 0.0
        %480 = vmatprep.subr.mxu0 0.0
        %481 = vmatpush2.msra.mxu0 0.0
        %482 = vmatprep.subr.mxu0 0.0
        %483 = vmatpush2.msra.mxu0 0.0
        %484 = vmatprep.mubr.f32.mxu0 0.0
        %485 = vmatmul.mubr.f32.gmra.mxu0 %v418
        %v486 = vpop.f32.mrf.mxu0
        %v487 = vadd.f32 0.0, %v486
        %v488 = vpop.f32.mrf.mxu0
        %489 = vdwg.mxu0
        %v490 = vrcp.pop %v413
        %v491 = vmul.f32 %v487, %v490
        %492 = vst.msk [vmem:[#allocation3] sm:$0xff] %vm328, %v491
        %v493 = vld [vmem:[#allocation2] sm:$0xff]
        %v494 = vmul.f32 %v493, 0.5
        %496 = vrot.lane.b32.xlu0 %v494, 124
        %v497 = vpop.permute.xlu0 %496
        %499 = vrot.lane.b32.xlu0 %v493, 92
        %v500 = vpop.permute.xlu0 %499
        %v501 = vsel %vm328, %v497, 0
        %v503 = vsel %vm328, %v500, 0
        %505 = vmatprep.subr.mxu0 0.0
        %506 = vmatpush1.xpose.msra.mxu0 0.0
        %507 = vmatprep.subr.mxu0 0.0
        %508 = vmatpush1.xpose.msra.mxu0 0.0
        %509 = vmatprep.subr.mxu0 0.0
        %510 = vmatpush1.xpose.msra.mxu0 0.0
        %511 = vmatprep.subr.mxu0 0.0
        %512 = vmatpush1.xpose.msra.mxu0 0.0
        %513 = vmatprep.subr.mxu0 0.0
        %514 = vmatpush1.xpose.msra.mxu0 0.0
        %515 = vmatprep.subr.mxu0 0.0
        %516 = vmatpush1.xpose.msra.mxu0 0.0
        %517 = vmatprep.subr.mxu0 0.0
        %518 = vmatpush1.xpose.msra.mxu0 0.0
        %519 = vmatprep.subr.mxu0 0.0
        %520 = vmatpush1.xpose.msra.mxu0 0.0
        %521 = vmatprep.subr.mxu0 0.0
        %522 = vmatpush1.xpose.msra.mxu0 0.0
        %523 = vmatprep.subr.mxu0 0.0
        %524 = vmatpush1.xpose.msra.mxu0 0.0
        %525 = vmatprep.subr.mxu0 0.0
        %526 = vmatpush1.xpose.msra.mxu0 0.0
        %527 = vmatprep.subr.mxu0 0.0
        %528 = vmatpush1.xpose.msra.mxu0 0.0
        %529 = vmatprep.subr.mxu0 0.0
        %530 = vmatpush1.xpose.msra.mxu0 0.0
        %531 = vmatprep.subr.mxu0 0.0
        %532 = vmatpush1.xpose.msra.mxu0 0.0
        %533 = vmatprep.subr.mxu0 0.0
        %534 = vmatpush1.xpose.msra.mxu0 0.0
        %535 = vmatprep.subr.mxu0 0.0
        %536 = vmatpush1.xpose.msra.mxu0 %v503
        %537 = vmatprep.subr.mxu0 0.0
        %538 = vmatpush2.xpose.msra.mxu0 0.0
        %539 = vmatprep.subr.mxu0 0.0
        %540 = vmatpush2.xpose.msra.mxu0 0.0
        %541 = vmatprep.subr.mxu0 0.0
        %542 = vmatpush2.xpose.msra.mxu0 0.0
        %543 = vmatprep.subr.mxu0 0.0
        %544 = vmatpush2.xpose.msra.mxu0 0.0
        %545 = vmatprep.subr.mxu0 0.0
        %546 = vmatpush2.xpose.msra.mxu0 0.0
        %547 = vmatprep.subr.mxu0 0.0
        %548 = vmatpush2.xpose.msra.mxu0 0.0
        %549 = vmatprep.subr.mxu0 0.0
        %550 = vmatpush2.xpose.msra.mxu0 0.0
        %551 = vmatprep.subr.mxu0 0.0
        %552 = vmatpush2.xpose.msra.mxu0 0.0
        %553 = vmatprep.subr.mxu0 0.0
        %554 = vmatpush2.xpose.msra.mxu0 0.0
        %555 = vmatprep.subr.mxu0 0.0
        %556 = vmatpush2.xpose.msra.mxu0 0.0
        %557 = vmatprep.subr.mxu0 0.0
        %558 = vmatpush2.xpose.msra.mxu0 0.0
        %559 = vmatprep.subr.mxu0 0.0
        %560 = vmatpush2.xpose.msra.mxu0 0.0
        %561 = vmatprep.subr.mxu0 0.0
        %562 = vmatpush2.xpose.msra.mxu0 0.0
        %563 = vmatprep.subr.mxu0 0.0
        %564 = vmatpush2.xpose.msra.mxu0 0.0
        %565 = vmatprep.subr.mxu0 0.0
        %566 = vmatpush2.xpose.msra.mxu0 0.0
        %567 = vmatprep.subr.mxu0 0.0
        %568 = vmatpush2.xpose.msra.mxu0 0.0
        %569 = vmatprep.mubr.f32.mxu0 0.0
        %570 = vmatmul.mubr.f32.gmra.mxu0 %v501
        %v571 = vpop.f32.mrf.mxu0
        %v572 = vadd.f32 0.0, %v571
        %v573 = vpop.f32.mrf.mxu0
        %574 = vdwg.mxu0
        %v575 = vsel %vm404, %v572, -inf
        %576 = vmax.xlane.f32.xlu0 %v575
        %v577 = vpop.xlane.xlu0 %576
        %v578 = vsub.f32 %v572, %v577
        %v579 = vmul.f32 %v578, 1.442695
        %v580 = vpow.pop %v579
        %v581 = vsel %vm404, %v580, 0.0
        %582 = vadd.xlane.f32.xlu0 %v581
        %v583 = vpop.xlane.xlu0 %582
        %584 = vrot.lane.b32.xlu0 %v493, 60
        %v585 = vpop.permute.xlu0 %584
        %v588 = vsel %vm404, %v580, 0
        %590 = vmatprep.subr.mxu0 0.0
        %591 = vmatpush1.msra.mxu0 0.0
        %592 = vmatprep.subr.mxu0 0.0
        %593 = vmatpush1.msra.mxu0 0.0
        %594 = vmatprep.subr.mxu0 0.0
        %595 = vmatpush1.msra.mxu0 0.0
        %596 = vmatprep.subr.mxu0 0.0
        %597 = vmatpush1.msra.mxu0 0.0
        %598 = vmatprep.subr.mxu0 0.0
        %599 = vmatpush1.msra.mxu0 0.0
        %600 = vmatprep.subr.mxu0 0.0
        %601 = vmatpush1.msra.mxu0 0.0
        %602 = vmatprep.subr.mxu0 0.0
        %603 = vmatpush1.msra.mxu0 0.0
        %604 = vmatprep.subr.mxu0 0.0
        %605 = vmatpush1.msra.mxu0 0.0
        %606 = vmatprep.subr.mxu0 0.0
        %607 = vmatpush1.msra.mxu0 0.0
        %608 = vmatprep.subr.mxu0 0.0
        %609 = vmatpush1.msra.mxu0 0.0
        %610 = vmatprep.subr.mxu0 0.0
        %611 = vmatpush1.msra.mxu0 0.0
        %612 = vmatprep.subr.mxu0 0.0
        %613 = vmatpush1.msra.mxu0 0.0
        %614 = vmatprep.subr.mxu0 0.0
        %615 = vmatpush1.msra.mxu0 0.0
        %616 = vmatprep.subr.mxu0 0.0
        %617 = vmatpush1.msra.mxu0 0.0
        %618 = vmatprep.subr.mxu0 0.0
        %619 = vmatpush1.msra.mxu0 0.0
        %620 = vmatprep.subr.mxu0 0.0
        %621 = vmatpush1.msra.mxu0 %v585
        %622 = vmatprep.subr.mxu0 0.0
        %623 = vmatpush2.msra.mxu0 0.0
        %624 = vmatprep.subr.mxu0 0.0
        %625 = vmatpush2.msra.mxu0 0.0
        %626 = vmatprep.subr.mxu0 0.0
        %627 = vmatpush2.msra.mxu0 0.0
        %628 = vmatprep.subr.mxu0 0.0
        %629 = vmatpush2.msra.mxu0 0.0
        %630 = vmatprep.subr.mxu0 0.0
        %631 = vmatpush2.msra.mxu0 0.0
        %632 = vmatprep.subr.mxu0 0.0
        %633 = vmatpush2.msra.mxu0 0.0
        %634 = vmatprep.subr.mxu0 0.0
        %635 = vmatpush2.msra.mxu0 0.0
        %636 = vmatprep.subr.mxu0 0.0
        %637 = vmatpush2.msra.mxu0 0.0
        %638 = vmatprep.subr.mxu0 0.0
        %639 = vmatpush2.msra.mxu0 0.0
        %640 = vmatprep.subr.mxu0 0.0
        %641 = vmatpush2.msra.mxu0 0.0
        %642 = vmatprep.subr.mxu0 0.0
        %643 = vmatpush2.msra.mxu0 0.0
        %644 = vmatprep.subr.mxu0 0.0
        %645 = vmatpush2.msra.mxu0 0.0
        %646 = vmatprep.subr.mxu0 0.0
        %647 = vmatpush2.msra.mxu0 0.0
        %648 = vmatprep.subr.mxu0 0.0
        %649 = vmatpush2.msra.mxu0 0.0
        %650 = vmatprep.subr.mxu0 0.0
        %651 = vmatpush2.msra.mxu0 0.0
        %652 = vmatprep.subr.mxu0 0.0
        %653 = vmatpush2.msra.mxu0 0.0
        %654 = vmatprep.mubr.f32.mxu0 0.0
        %655 = vmatmul.mubr.f32.gmra.mxu0 %v588
        %v656 = vpop.f32.mrf.mxu0
        %v657 = vadd.f32 0.0, %v656
        %v658 = vpop.f32.mrf.mxu0
        %659 = vdwg.mxu0
        %v660 = vrcp.pop %v583
        %v661 = vmul.f32 %v657, %v660
        %663 = vrot.lane.b32.xlu0 %v661, 4
        %v664 = vpop.permute.xlu0 %663
        %vm666 = vcmask 64544
        %667 = vst.msk [vmem:[#allocation3] sm:$0xff] %vm666, %v664
        %v668 = vld [vmem:[#allocation2] sm:$0xff]
        %v669 = vmul.f32 %v668, 0.5
        %671 = vrot.lane.b32.xlu0 %v669, 120
        %v672 = vpop.permute.xlu0 %671
        %674 = vrot.lane.b32.xlu0 %v668, 88
        %v675 = vpop.permute.xlu0 %674
        %v676 = vsel %vm328, %v672, 0
        %v678 = vsel %vm328, %v675, 0
        %680 = vmatprep.subr.mxu0 0.0
        %681 = vmatpush1.xpose.msra.mxu0 0.0
        %682 = vmatprep.subr.mxu0 0.0
        %683 = vmatpush1.xpose.msra.mxu0 0.0
        %684 = vmatprep.subr.mxu0 0.0
        %685 = vmatpush1.xpose.msra.mxu0 0.0
        %686 = vmatprep.subr.mxu0 0.0
        %687 = vmatpush1.xpose.msra.mxu0 0.0
        %688 = vmatprep.subr.mxu0 0.0
        %689 = vmatpush1.xpose.msra.mxu0 0.0
        %690 = vmatprep.subr.mxu0 0.0
        %691 = vmatpush1.xpose.msra.mxu0 0.0
        %692 = vmatprep.subr.mxu0 0.0
        %693 = vmatpush1.xpose.msra.mxu0 0.0
        %694 = vmatprep.subr.mxu0 0.0
        %695 = vmatpush1.xpose.msra.mxu0 0.0
        %696 = vmatprep.subr.mxu0 0.0
        %697 = vmatpush1.xpose.msra.mxu0 0.0
        %698 = vmatprep.subr.mxu0 0.0
        %699 = vmatpush1.xpose.msra.mxu0 0.0
        %700 = vmatprep.subr.mxu0 0.0
        %701 = vmatpush1.xpose.msra.mxu0 0.0
        %702 = vmatprep.subr.mxu0 0.0
        %703 = vmatpush1.xpose.msra.mxu0 0.0
        %704 = vmatprep.subr.mxu0 0.0
        %705 = vmatpush1.xpose.msra.mxu0 0.0
        %706 = vmatprep.subr.mxu0 0.0
        %707 = vmatpush1.xpose.msra.mxu0 0.0
        %708 = vmatprep.subr.mxu0 0.0
        %709 = vmatpush1.xpose.msra.mxu0 0.0
        %710 = vmatprep.subr.mxu0 0.0
        %711 = vmatpush1.xpose.msra.mxu0 %v678
        %712 = vmatprep.subr.mxu0 0.0
        %713 = vmatpush2.xpose.msra.mxu0 0.0
        %714 = vmatprep.subr.mxu0 0.0
        %715 = vmatpush2.xpose.msra.mxu0 0.0
        %716 = vmatprep.subr.mxu0 0.0
        %717 = vmatpush2.xpose.msra.mxu0 0.0
        %718 = vmatprep.subr.mxu0 0.0
        %719 = vmatpush2.xpose.msra.mxu0 0.0
        %720 = vmatprep.subr.mxu0 0.0
        %721 = vmatpush2.xpose.msra.mxu0 0.0
        %722 = vmatprep.subr.mxu0 0.0
        %723 = vmatpush2.xpose.msra.mxu0 0.0
        %724 = vmatprep.subr.mxu0 0.0
        %725 = vmatpush2.xpose.msra.mxu0 0.0
        %726 = vmatprep.subr.mxu0 0.0
        %727 = vmatpush2.xpose.msra.mxu0 0.0
        %728 = vmatprep.subr.mxu0 0.0
        %729 = vmatpush2.xpose.msra.mxu0 0.0
        %730 = vmatprep.subr.mxu0 0.0
        %731 = vmatpush2.xpose.msra.mxu0 0.0
        %732 = vmatprep.subr.mxu0 0.0
        %733 = vmatpush2.xpose.msra.mxu0 0.0
        %734 = vmatprep.subr.mxu0 0.0
        %735 = vmatpush2.xpose.msra.mxu0 0.0
        %736 = vmatprep.subr.mxu0 0.0
        %737 = vmatpush2.xpose.msra.mxu0 0.0
        %738 = vmatprep.subr.mxu0 0.0
        %739 = vmatpush2.xpose.msra.mxu0 0.0
        %740 = vmatprep.subr.mxu0 0.0
        %741 = vmatpush2.xpose.msra.mxu0 0.0
        %742 = vmatprep.subr.mxu0 0.0
        %743 = vmatpush2.xpose.msra.mxu0 0.0
        %744 = vmatprep.mubr.f32.mxu0 0.0
        %745 = vmatmul.mubr.f32.gmra.mxu0 %v676
        %v746 = vpop.f32.mrf.mxu0
        %v747 = vadd.f32 0.0, %v746
        %v748 = vpop.f32.mrf.mxu0
        %749 = vdwg.mxu0
        %v750 = vsel %vm404, %v747, -inf
        %751 = vmax.xlane.f32.xlu0 %v750
        %v752 = vpop.xlane.xlu0 %751
        %v753 = vsub.f32 %v747, %v752
        %v754 = vmul.f32 %v753, 1.442695
        %v755 = vpow.pop %v754
        %v756 = vsel %vm404, %v755, 0.0
        %757 = vadd.xlane.f32.xlu0 %v756
        %v758 = vpop.xlane.xlu0 %757
        %759 = vrot.lane.b32.xlu0 %v668, 56
        %v760 = vpop.permute.xlu0 %759
        %v763 = vsel %vm404, %v755, 0
        %765 = vmatprep.subr.mxu0 0.0
        %766 = vmatpush1.msra.mxu0 0.0
        %767 = vmatprep.subr.mxu0 0.0
        %768 = vmatpush1.msra.mxu0 0.0
        %769 = vmatprep.subr.mxu0 0.0
        %770 = vmatpush1.msra.mxu0 0.0
        %771 = vmatprep.subr.mxu0 0.0
        %772 = vmatpush1.msra.mxu0 0.0
        %773 = vmatprep.subr.mxu0 0.0
        %774 = vmatpush1.msra.mxu0 0.0
        %775 = vmatprep.subr.mxu0 0.0
        %776 = vmatpush1.msra.mxu0 0.0
        %777 = vmatprep.subr.mxu0 0.0
        %778 = vmatpush1.msra.mxu0 0.0
        %779 = vmatprep.subr.mxu0 0.0
        %780 = vmatpush1.msra.mxu0 0.0
        %781 = vmatprep.subr.mxu0 0.0
        %782 = vmatpush1.msra.mxu0 0.0
        %783 = vmatprep.subr.mxu0 0.0
        %784 = vmatpush1.msra.mxu0 0.0
        %785 = vmatprep.subr.mxu0 0.0
        %786 = vmatpush1.msra.mxu0 0.0
        %787 = vmatprep.subr.mxu0 0.0
        %788 = vmatpush1.msra.mxu0 0.0
        %789 = vmatprep.subr.mxu0 0.0
        %790 = vmatpush1.msra.mxu0 0.0
        %791 = vmatprep.subr.mxu0 0.0
        %792 = vmatpush1.msra.mxu0 0.0
        %793 = vmatprep.subr.mxu0 0.0
        %794 = vmatpush1.msra.mxu0 0.0
        %795 = vmatprep.subr.mxu0 0.0
        %796 = vmatpush1.msra.mxu0 %v760
        %797 = vmatprep.subr.mxu0 0.0
        %798 = vmatpush2.msra.mxu0 0.0
        %799 = vmatprep.subr.mxu0 0.0
        %800 = vmatpush2.msra.mxu0 0.0
        %801 = vmatprep.subr.mxu0 0.0
        %802 = vmatpush2.msra.mxu0 0.0
        %803 = vmatprep.subr.mxu0 0.0
        %804 = vmatpush2.msra.mxu0 0.0
        %805 = vmatprep.subr.mxu0 0.0
        %806 = vmatpush2.msra.mxu0 0.0
        %807 = vmatprep.subr.mxu0 0.0
        %808 = vmatpush2.msra.mxu0 0.0
        %809 = vmatprep.subr.mxu0 0.0
        %810 = vmatpush2.msra.mxu0 0.0
        %811 = vmatprep.subr.mxu0 0.0
        %812 = vmatpush2.msra.mxu0 0.0
        %813 = vmatprep.subr.mxu0 0.0
        %814 = vmatpush2.msra.mxu0 0.0
        %815 = vmatprep.subr.mxu0 0.0
        %816 = vmatpush2.msra.mxu0 0.0
        %817 = vmatprep.subr.mxu0 0.0
        %818 = vmatpush2.msra.mxu0 0.0
        %819 = vmatprep.subr.mxu0 0.0
        %820 = vmatpush2.msra.mxu0 0.0
        %821 = vmatprep.subr.mxu0 0.0
        %822 = vmatpush2.msra.mxu0 0.0
        %823 = vmatprep.subr.mxu0 0.0
        %824 = vmatpush2.msra.mxu0 0.0
        %825 = vmatprep.subr.mxu0 0.0
        %826 = vmatpush2.msra.mxu0 0.0
        %827 = vmatprep.subr.mxu0 0.0
        %828 = vmatpush2.msra.mxu0 0.0
        %829 = vmatprep.mubr.f32.mxu0 0.0
        %830 = vmatmul.mubr.f32.gmra.mxu0 %v763
        %v831 = vpop.f32.mrf.mxu0
        %v832 = vadd.f32 0.0, %v831
        %v833 = vpop.f32.mrf.mxu0
        %834 = vdwg.mxu0
        %v835 = vrcp.pop %v758
        %v836 = vmul.f32 %v832, %v835
        %838 = vrot.lane.b32.xlu0 %v836, 8
        %v839 = vpop.permute.xlu0 %838
        %vm841 = vcmask 97344
        %842 = vst.msk [vmem:[#allocation3] sm:$0xff] %vm841, %v839
        %v843 = vld [vmem:[#allocation2] sm:$0xff]
        %v844 = vmul.f32 %v843, 0.5
        %846 = vrot.lane.b32.xlu0 %v844, 116
        %v847 = vpop.permute.xlu0 %846
        %849 = vrot.lane.b32.xlu0 %v843, 84
        %v850 = vpop.permute.xlu0 %849
        %v851 = vsel %vm328, %v847, 0
        %v853 = vsel %vm328, %v850, 0
        %855 = vmatprep.subr.mxu0 0.0
        %856 = vmatpush1.xpose.msra.mxu0 0.0
        %857 = vmatprep.subr.mxu0 0.0
        %858 = vmatpush1.xpose.msra.mxu0 0.0
        %859 = vmatprep.subr.mxu0 0.0
        %860 = vmatpush1.xpose.msra.mxu0 0.0
        %861 = vmatprep.subr.mxu0 0.0
        %862 = vmatpush1.xpose.msra.mxu0 0.0
        %863 = vmatprep.subr.mxu0 0.0
        %864 = vmatpush1.xpose.msra.mxu0 0.0
        %865 = vmatprep.subr.mxu0 0.0
        %866 = vmatpush1.xpose.msra.mxu0 0.0
        %867 = vmatprep.subr.mxu0 0.0
        %868 = vmatpush1.xpose.msra.mxu0 0.0
        %869 = vmatprep.subr.mxu0 0.0
        %870 = vmatpush1.xpose.msra.mxu0 0.0
        %871 = vmatprep.subr.mxu0 0.0
        %872 = vmatpush1.xpose.msra.mxu0 0.0
        %873 = vmatprep.subr.mxu0 0.0
        %874 = vmatpush1.xpose.msra.mxu0 0.0
        %875 = vmatprep.subr.mxu0 0.0
        %876 = vmatpush1.xpose.msra.mxu0 0.0
        %877 = vmatprep.subr.mxu0 0.0
        %878 = vmatpush1.xpose.msra.mxu0 0.0
        %879 = vmatprep.subr.mxu0 0.0
        %880 = vmatpush1.xpose.msra.mxu0 0.0
        %881 = vmatprep.subr.mxu0 0.0
        %882 = vmatpush1.xpose.msra.mxu0 0.0
        %883 = vmatprep.subr.mxu0 0.0
        %884 = vmatpush1.xpose.msra.mxu0 0.0
        %885 = vmatprep.subr.mxu0 0.0
        %886 = vmatpush1.xpose.msra.mxu0 %v853
        %887 = vmatprep.subr.mxu0 0.0
        %888 = vmatpush2.xpose.msra.mxu0 0.0
        %889 = vmatprep.subr.mxu0 0.0
        %890 = vmatpush2.xpose.msra.mxu0 0.0
        %891 = vmatprep.subr.mxu0 0.0
        %892 = vmatpush2.xpose.msra.mxu0 0.0
        %893 = vmatprep.subr.mxu0 0.0
        %894 = vmatpush2.xpose.msra.mxu0 0.0
        %895 = vmatprep.subr.mxu0 0.0
        %896 = vmatpush2.xpose.msra.mxu0 0.0
        %897 = vmatprep.subr.mxu0 0.0
        %898 = vmatpush2.xpose.msra.mxu0 0.0
        %899 = vmatprep.subr.mxu0 0.0
        %900 = vmatpush2.xpose.msra.mxu0 0.0
        %901 = vmatprep.subr.mxu0 0.0
        %902 = vmatpush2.xpose.msra.mxu0 0.0
        %903 = vmatprep.subr.mxu0 0.0
        %904 = vmatpush2.xpose.msra.mxu0 0.0
        %905 = vmatprep.subr.mxu0 0.0
        %906 = vmatpush2.xpose.msra.mxu0 0.0
        %907 = vmatprep.subr.mxu0 0.0
        %908 = vmatpush2.xpose.msra.mxu0 0.0
        %909 = vmatprep.subr.mxu0 0.0
        %910 = vmatpush2.xpose.msra.mxu0 0.0
        %911 = vmatprep.subr.mxu0 0.0
        %912 = vmatpush2.xpose.msra.mxu0 0.0
        %913 = vmatprep.subr.mxu0 0.0
        %914 = vmatpush2.xpose.msra.mxu0 0.0
        %915 = vmatprep.subr.mxu0 0.0
        %916 = vmatpush2.xpose.msra.mxu0 0.0
        %917 = vmatprep.subr.mxu0 0.0
        %918 = vmatpush2.xpose.msra.mxu0 0.0
        %919 = vmatprep.mubr.f32.mxu0 0.0
        %920 = vmatmul.mubr.f32.gmra.mxu0 %v851
        %v921 = vpop.f32.mrf.mxu0
        %v922 = vadd.f32 0.0, %v921
        %v923 = vpop.f32.mrf.mxu0
        %924 = vdwg.mxu0
        %v925 = vsel %vm404, %v922, -inf
        %926 = vmax.xlane.f32.xlu0 %v925
        %v927 = vpop.xlane.xlu0 %926
        %v928 = vsub.f32 %v922, %v927
        %v929 = vmul.f32 %v928, 1.442695
        %v930 = vpow.pop %v929
        %v931 = vsel %vm404, %v930, 0.0
        %932 = vadd.xlane.f32.xlu0 %v931
        %v933 = vpop.xlane.xlu0 %932
        %934 = vrot.lane.b32.xlu0 %v843, 52
        %v935 = vpop.permute.xlu0 %934
        %v938 = vsel %vm404, %v930, 0
        %940 = vmatprep.subr.mxu0 0.0
        %941 = vmatpush1.msra.mxu0 0.0
        %942 = vmatprep.subr.mxu0 0.0
        %943 = vmatpush1.msra.mxu0 0.0
        %944 = vmatprep.subr.mxu0 0.0
        %945 = vmatpush1.msra.mxu0 0.0
        %946 = vmatprep.subr.mxu0 0.0
        %947 = vmatpush1.msra.mxu0 0.0
        %948 = vmatprep.subr.mxu0 0.0
        %949 = vmatpush1.msra.mxu0 0.0
        %950 = vmatprep.subr.mxu0 0.0
        %951 = vmatpush1.msra.mxu0 0.0
        %952 = vmatprep.subr.mxu0 0.0
        %953 = vmatpush1.msra.mxu0 0.0
        %954 = vmatprep.subr.mxu0 0.0
        %955 = vmatpush1.msra.mxu0 0.0
        %956 = vmatprep.subr.mxu0 0.0
        %957 = vmatpush1.msra.mxu0 0.0
        %958 = vmatprep.subr.mxu0 0.0
        %959 = vmatpush1.msra.mxu0 0.0
        %960 = vmatprep.subr.mxu0 0.0
        %961 = vmatpush1.msra.mxu0 0.0
        %962 = vmatprep.subr.mxu0 0.0
        %963 = vmatpush1.msra.mxu0 0.0
        %964 = vmatprep.subr.mxu0 0.0
        %965 = vmatpush1.msra.mxu0 0.0
        %966 = vmatprep.subr.mxu0 0.0
        %967 = vmatpush1.msra.mxu0 0.0
        %968 = vmatprep.subr.mxu0 0.0
        %969 = vmatpush1.msra.mxu0 0.0
        %970 = vmatprep.subr.mxu0 0.0
        %971 = vmatpush1.msra.mxu0 %v935
        %972 = vmatprep.subr.mxu0 0.0
        %973 = vmatpush2.msra.mxu0 0.0
        %974 = vmatprep.subr.mxu0 0.0
        %975 = vmatpush2.msra.mxu0 0.0
        %976 = vmatprep.subr.mxu0 0.0
        %977 = vmatpush2.msra.mxu0 0.0
        %978 = vmatprep.subr.mxu0 0.0
        %979 = vmatpush2.msra.mxu0 0.0
        %980 = vmatprep.subr.mxu0 0.0
        %981 = vmatpush2.msra.mxu0 0.0
        %982 = vmatprep.subr.mxu0 0.0
        %983 = vmatpush2.msra.mxu0 0.0
        %984 = vmatprep.subr.mxu0 0.0
        %985 = vmatpush2.msra.mxu0 0.0
        %986 = vmatprep.subr.mxu0 0.0
        %987 = vmatpush2.msra.mxu0 0.0
        %988 = vmatprep.subr.mxu0 0.0
        %989 = vmatpush2.msra.mxu0 0.0
        %990 = vmatprep.subr.mxu0 0.0
        %991 = vmatpush2.msra.mxu0 0.0
        %992 = vmatprep.subr.mxu0 0.0
        %993 = vmatpush2.msra.mxu0 0.0
        %994 = vmatprep.subr.mxu0 0.0
        %995 = vmatpush2.msra.mxu0 0.0
        %996 = vmatprep.subr.mxu0 0.0
        %997 = vmatpush2.msra.mxu0 0.0
        %998 = vmatprep.subr.mxu0 0.0
        %999 = vmatpush2.msra.mxu0 0.0
        %1000 = vmatprep.subr.mxu0 0.0
        %1001 = vmatpush2.msra.mxu0 0.0
        %1002 = vmatprep.subr.mxu0 0.0
        %1003 = vmatpush2.msra.mxu0 0.0
        %1004 = vmatprep.mubr.f32.mxu0 0.0
        %1005 = vmatmul.mubr.f32.gmra.mxu0 %v938
        %v1006 = vpop.f32.mrf.mxu0
        %v1007 = vadd.f32 0.0, %v1006
        %v1008 = vpop.f32.mrf.mxu0
        %1009 = vdwg.mxu0
        %v1010 = vrcp.pop %v933
        %v1011 = vmul.f32 %v1007, %v1010
        %1013 = vrot.lane.b32.xlu0 %v1011, 12
        %v1014 = vpop.permute.xlu0 %1013
        %vm1016 = vcmask 130144
        %1017 = vst.msk [vmem:[#allocation3] sm:$0xff] %vm1016, %v1014
        %v1018 = vld [vmem:[#allocation2] sm:$0xff]
        %v1019 = vmul.f32 %v1018, 0.5
        %1021 = vrot.lane.b32.xlu0 %v1019, 112
        %v1022 = vpop.permute.xlu0 %1021
        %1024 = vrot.lane.b32.xlu0 %v1018, 80
        %v1025 = vpop.permute.xlu0 %1024
        %v1026 = vsel %vm328, %v1022, 0
        %v1028 = vsel %vm328, %v1025, 0
        %1030 = vmatprep.subr.mxu0 0.0
        %1031 = vmatpush1.xpose.msra.mxu0 0.0
        %1032 = vmatprep.subr.mxu0 0.0
        %1033 = vmatpush1.xpose.msra.mxu0 0.0
        %1034 = vmatprep.subr.mxu0 0.0
        %1035 = vmatpush1.xpose.msra.mxu0 0.0
        %1036 = vmatprep.subr.mxu0 0.0
        %1037 = vmatpush1.xpose.msra.mxu0 0.0
        %1038 = vmatprep.subr.mxu0 0.0
        %1039 = vmatpush1.xpose.msra.mxu0 0.0
        %1040 = vmatprep.subr.mxu0 0.0
        %1041 = vmatpush1.xpose.msra.mxu0 0.0
        %1042 = vmatprep.subr.mxu0 0.0
        %1043 = vmatpush1.xpose.msra.mxu0 0.0
        %1044 = vmatprep.subr.mxu0 0.0
        %1045 = vmatpush1.xpose.msra.mxu0 0.0
        %1046 = vmatprep.subr.mxu0 0.0
        %1047 = vmatpush1.xpose.msra.mxu0 0.0
        %1048 = vmatprep.subr.mxu0 0.0
        %1049 = vmatpush1.xpose.msra.mxu0 0.0
        %1050 = vmatprep.subr.mxu0 0.0
        %1051 = vmatpush1.xpose.msra.mxu0 0.0
        %1052 = vmatprep.subr.mxu0 0.0
        %1053 = vmatpush1.xpose.msra.mxu0 0.0
        %1054 = vmatprep.subr.mxu0 0.0
        %1055 = vmatpush1.xpose.msra.mxu0 0.0
        %1056 = vmatprep.subr.mxu0 0.0
        %1057 = vmatpush1.xpose.msra.mxu0 0.0
        %1058 = vmatprep.subr.mxu0 0.0
        %1059 = vmatpush1.xpose.msra.mxu0 0.0
        %1060 = vmatprep.subr.mxu0 0.0
        %1061 = vmatpush1.xpose.msra.mxu0 %v1028
        %1062 = vmatprep.subr.mxu0 0.0
        %1063 = vmatpush2.xpose.msra.mxu0 0.0
        %1064 = vmatprep.subr.mxu0 0.0
        %1065 = vmatpush2.xpose.msra.mxu0 0.0
        %1066 = vmatprep.subr.mxu0 0.0
        %1067 = vmatpush2.xpose.msra.mxu0 0.0
        %1068 = vmatprep.subr.mxu0 0.0
        %1069 = vmatpush2.xpose.msra.mxu0 0.0
        %1070 = vmatprep.subr.mxu0 0.0
        %1071 = vmatpush2.xpose.msra.mxu0 0.0
        %1072 = vmatprep.subr.mxu0 0.0
        %1073 = vmatpush2.xpose.msra.mxu0 0.0
        %1074 = vmatprep.subr.mxu0 0.0
        %1075 = vmatpush2.xpose.msra.mxu0 0.0
        %1076 = vmatprep.subr.mxu0 0.0
        %1077 = vmatpush2.xpose.msra.mxu0 0.0
        %1078 = vmatprep.subr.mxu0 0.0
        %1079 = vmatpush2.xpose.msra.mxu0 0.0
        %1080 = vmatprep.subr.mxu0 0.0
        %1081 = vmatpush2.xpose.msra.mxu0 0.0
        %1082 = vmatprep.subr.mxu0 0.0
        %1083 = vmatpush2.xpose.msra.mxu0 0.0
        %1084 = vmatprep.subr.mxu0 0.0
        %1085 = vmatpush2.xpose.msra.mxu0 0.0
        %1086 = vmatprep.subr.mxu0 0.0
        %1087 = vmatpush2.xpose.msra.mxu0 0.0
        %1088 = vmatprep.subr.mxu0 0.0
        %1089 = vmatpush2.xpose.msra.mxu0 0.0
        %1090 = vmatprep.subr.mxu0 0.0
        %1091 = vmatpush2.xpose.msra.mxu0 0.0
        %1092 = vmatprep.subr.mxu0 0.0
        %1093 = vmatpush2.xpose.msra.mxu0 0.0
        %1094 = vmatprep.mubr.f32.mxu0 0.0
        %1095 = vmatmul.mubr.f32.gmra.mxu0 %v1026
        %v1096 = vpop.f32.mrf.mxu0
        %v1097 = vadd.f32 0.0, %v1096
        %v1098 = vpop.f32.mrf.mxu0
        %1099 = vdwg.mxu0
        %v1100 = vsel %vm404, %v1097, -inf
        %1101 = vmax.xlane.f32.xlu0 %v1100
        %v1102 = vpop.xlane.xlu0 %1101
        %v1103 = vsub.f32 %v1097, %v1102
        %v1104 = vmul.f32 %v1103, 1.442695
        %v1105 = vpow.pop %v1104
        %v1106 = vsel %vm404, %v1105, 0.0
        %1107 = vadd.xlane.f32.xlu0 %v1106
        %v1108 = vpop.xlane.xlu0 %1107
        %1109 = vrot.lane.b32.xlu0 %v1018, 48
        %v1110 = vpop.permute.xlu0 %1109
        %v1113 = vsel %vm404, %v1105, 0
        %1115 = vmatprep.subr.mxu0 0.0
        %1116 = vmatpush1.msra.mxu0 0.0
        %1117 = vmatprep.subr.mxu0 0.0
        %1118 = vmatpush1.msra.mxu0 0.0
        %1119 = vmatprep.subr.mxu0 0.0
        %1120 = vmatpush1.msra.mxu0 0.0
        %1121 = vmatprep.subr.mxu0 0.0
        %1122 = vmatpush1.msra.mxu0 0.0
        %1123 = vmatprep.subr.mxu0 0.0
        %1124 = vmatpush1.msra.mxu0 0.0
        %1125 = vmatprep.subr.mxu0 0.0
        %1126 = vmatpush1.msra.mxu0 0.0
        %1127 = vmatprep.subr.mxu0 0.0
        %1128 = vmatpush1.msra.mxu0 0.0
        %1129 = vmatprep.subr.mxu0 0.0
        %1130 = vmatpush1.msra.mxu0 0.0
        %1131 = vmatprep.subr.mxu0 0.0
        %1132 = vmatpush1.msra.mxu0 0.0
        %1133 = vmatprep.subr.mxu0 0.0
        %1134 = vmatpush1.msra.mxu0 0.0
        %1135 = vmatprep.subr.mxu0 0.0
        %1136 = vmatpush1.msra.mxu0 0.0
        %1137 = vmatprep.subr.mxu0 0.0
        %1138 = vmatpush1.msra.mxu0 0.0
        %1139 = vmatprep.subr.mxu0 0.0
        %1140 = vmatpush1.msra.mxu0 0.0
        %1141 = vmatprep.subr.mxu0 0.0
        %1142 = vmatpush1.msra.mxu0 0.0
        %1143 = vmatprep.subr.mxu0 0.0
        %1144 = vmatpush1.msra.mxu0 0.0
        %1145 = vmatprep.subr.mxu0 0.0
        %1146 = vmatpush1.msra.mxu0 %v1110
        %1147 = vmatprep.subr.mxu0 0.0
        %1148 = vmatpush2.msra.mxu0 0.0
        %1149 = vmatprep.subr.mxu0 0.0
        %1150 = vmatpush2.msra.mxu0 0.0
        %1151 = vmatprep.subr.mxu0 0.0
        %1152 = vmatpush2.msra.mxu0 0.0
        %1153 = vmatprep.subr.mxu0 0.0
        %1154 = vmatpush2.msra.mxu0 0.0
        %1155 = vmatprep.subr.mxu0 0.0
        %1156 = vmatpush2.msra.mxu0 0.0
        %1157 = vmatprep.subr.mxu0 0.0
        %1158 = vmatpush2.msra.mxu0 0.0
        %1159 = vmatprep.subr.mxu0 0.0
        %1160 = vmatpush2.msra.mxu0 0.0
        %1161 = vmatprep.subr.mxu0 0.0
        %1162 = vmatpush2.msra.mxu0 0.0
        %1163 = vmatprep.subr.mxu0 0.0
        %1164 = vmatpush2.msra.mxu0 0.0
        %1165 = vmatprep.subr.mxu0 0.0
        %1166 = vmatpush2.msra.mxu0 0.0
        %1167 = vmatprep.subr.mxu0 0.0
        %1168 = vmatpush2.msra.mxu0 0.0
        %1169 = vmatprep.subr.mxu0 0.0
        %1170 = vmatpush2.msra.mxu0 0.0
        %1171 = vmatprep.subr.mxu0 0.0
        %1172 = vmatpush2.msra.mxu0 0.0
        %1173 = vmatprep.subr.mxu0 0.0
        %1174 = vmatpush2.msra.mxu0 0.0
        %1175 = vmatprep.subr.mxu0 0.0
        %1176 = vmatpush2.msra.mxu0 0.0
        %1177 = vmatprep.subr.mxu0 0.0
        %1178 = vmatpush2.msra.mxu0 0.0
        %1179 = vmatprep.mubr.f32.mxu0 0.0
        %1180 = vmatmul.mubr.f32.gmra.mxu0 %v1113
        %v1181 = vpop.f32.mrf.mxu0
        %v1182 = vadd.f32 0.0, %v1181
        %v1183 = vpop.f32.mrf.mxu0
        %1184 = vdwg.mxu0
        %v1185 = vrcp.pop %v1108
        %v1186 = vmul.f32 %v1182, %v1185
        %1188 = vrot.lane.b32.xlu0 %v1186, 16
        %v1189 = vpop.permute.xlu0 %1188
        %vm1191 = vcmask 162944
        %1192 = vst.msk [vmem:[#allocation3] sm:$0xff] %vm1191, %v1189
        %v1193 = vld [vmem:[#allocation2] sm:$0xff]
        %v1194 = vmul.f32 %v1193, 0.5
        %1196 = vrot.lane.b32.xlu0 %v1194, 108
        %v1197 = vpop.permute.xlu0 %1196
        %1199 = vrot.lane.b32.xlu0 %v1193, 76
        %v1200 = vpop.permute.xlu0 %1199
        %v1201 = vsel %vm328, %v1197, 0
        %v1203 = vsel %vm328, %v1200, 0
        %1205 = vmatprep.subr.mxu0 0.0
        %1206 = vmatpush1.xpose.msra.mxu0 0.0
        %1207 = vmatprep.subr.mxu0 0.0
        %1208 = vmatpush1.xpose.msra.mxu0 0.0
        %1209 = vmatprep.subr.mxu0 0.0
        %1210 = vmatpush1.xpose.msra.mxu0 0.0
        %1211 = vmatprep.subr.mxu0 0.0
        %1212 = vmatpush1.xpose.msra.mxu0 0.0
        %1213 = vmatprep.subr.mxu0 0.0
        %1214 = vmatpush1.xpose.msra.mxu0 0.0
        %1215 = vmatprep.subr.mxu0 0.0
        %1216 = vmatpush1.xpose.msra.mxu0 0.0
        %1217 = vmatprep.subr.mxu0 0.0
        %1218 = vmatpush1.xpose.msra.mxu0 0.0
        %1219 = vmatprep.subr.mxu0 0.0
        %1220 = vmatpush1.xpose.msra.mxu0 0.0
        %1221 = vmatprep.subr.mxu0 0.0
        %1222 = vmatpush1.xpose.msra.mxu0 0.0
        %1223 = vmatprep.subr.mxu0 0.0
        %1224 = vmatpush1.xpose.msra.mxu0 0.0
        %1225 = vmatprep.subr.mxu0 0.0
        %1226 = vmatpush1.xpose.msra.mxu0 0.0
        %1227 = vmatprep.subr.mxu0 0.0
        %1228 = vmatpush1.xpose.msra.mxu0 0.0
        %1229 = vmatprep.subr.mxu0 0.0
        %1230 = vmatpush1.xpose.msra.mxu0 0.0
        %1231 = vmatprep.subr.mxu0 0.0
        %1232 = vmatpush1.xpose.msra.mxu0 0.0
        %1233 = vmatprep.subr.mxu0 0.0
        %1234 = vmatpush1.xpose.msra.mxu0 0.0
        %1235 = vmatprep.subr.mxu0 0.0
        %1236 = vmatpush1.xpose.msra.mxu0 %v1203
        %1237 = vmatprep.subr.mxu0 0.0
        %1238 = vmatpush2.xpose.msra.mxu0 0.0
        %1239 = vmatprep.subr.mxu0 0.0
        %1240 = vmatpush2.xpose.msra.mxu0 0.0
        %1241 = vmatprep.subr.mxu0 0.0
        %1242 = vmatpush2.xpose.msra.mxu0 0.0
        %1243 = vmatprep.subr.mxu0 0.0
        %1244 = vmatpush2.xpose.msra.mxu0 0.0
        %1245 = vmatprep.subr.mxu0 0.0
        %1246 = vmatpush2.xpose.msra.mxu0 0.0
        %1247 = vmatprep.subr.mxu0 0.0
        %1248 = vmatpush2.xpose.msra.mxu0 0.0
        %1249 = vmatprep.subr.mxu0 0.0
        %1250 = vmatpush2.xpose.msra.mxu0 0.0
        %1251 = vmatprep.subr.mxu0 0.0
        %1252 = vmatpush2.xpose.msra.mxu0 0.0
        %1253 = vmatprep.subr.mxu0 0.0
        %1254 = vmatpush2.xpose.msra.mxu0 0.0
        %1255 = vmatprep.subr.mxu0 0.0
        %1256 = vmatpush2.xpose.msra.mxu0 0.0
        %1257 = vmatprep.subr.mxu0 0.0
        %1258 = vmatpush2.xpose.msra.mxu0 0.0
        %1259 = vmatprep.subr.mxu0 0.0
        %1260 = vmatpush2.xpose.msra.mxu0 0.0
        %1261 = vmatprep.subr.mxu0 0.0
        %1262 = vmatpush2.xpose.msra.mxu0 0.0
        %1263 = vmatprep.subr.mxu0 0.0
        %1264 = vmatpush2.xpose.msra.mxu0 0.0
        %1265 = vmatprep.subr.mxu0 0.0
        %1266 = vmatpush2.xpose.msra.mxu0 0.0
        %1267 = vmatprep.subr.mxu0 0.0
        %1268 = vmatpush2.xpose.msra.mxu0 0.0
        %1269 = vmatprep.mubr.f32.mxu0 0.0
        %1270 = vmatmul.mubr.f32.gmra.mxu0 %v1201
        %v1271 = vpop.f32.mrf.mxu0
        %v1272 = vadd.f32 0.0, %v1271
        %v1273 = vpop.f32.mrf.mxu0
        %1274 = vdwg.mxu0
        %v1275 = vsel %vm404, %v1272, -inf
        %1276 = vmax.xlane.f32.xlu0 %v1275
        %v1277 = vpop.xlane.xlu0 %1276
        %v1278 = vsub.f32 %v1272, %v1277
        %v1279 = vmul.f32 %v1278, 1.442695
        %v1280 = vpow.pop %v1279
        %v1281 = vsel %vm404, %v1280, 0.0
        %1282 = vadd.xlane.f32.xlu0 %v1281
        %v1283 = vpop.xlane.xlu0 %1282
        %1284 = vrot.lane.b32.xlu0 %v1193, 44
        %v1285 = vpop.permute.xlu0 %1284
        %v1288 = vsel %vm404, %v1280, 0
        %1290 = vmatprep.subr.mxu0 0.0
        %1291 = vmatpush1.msra.mxu0 0.0
        %1292 = vmatprep.subr.mxu0 0.0
        %1293 = vmatpush1.msra.mxu0 0.0
        %1294 = vmatprep.subr.mxu0 0.0
        %1295 = vmatpush1.msra.mxu0 0.0
        %1296 = vmatprep.subr.mxu0 0.0
        %1297 = vmatpush1.msra.mxu0 0.0
        %1298 = vmatprep.subr.mxu0 0.0
        %1299 = vmatpush1.msra.mxu0 0.0
        %1300 = vmatprep.subr.mxu0 0.0
        %1301 = vmatpush1.msra.mxu0 0.0
        %1302 = vmatprep.subr.mxu0 0.0
        %1303 = vmatpush1.msra.mxu0 0.0
        %1304 = vmatprep.subr.mxu0 0.0
        %1305 = vmatpush1.msra.mxu0 0.0
        %1306 = vmatprep.subr.mxu0 0.0
        %1307 = vmatpush1.msra.mxu0 0.0
        %1308 = vmatprep.subr.mxu0 0.0
        %1309 = vmatpush1.msra.mxu0 0.0
        %1310 = vmatprep.subr.mxu0 0.0
        %1311 = vmatpush1.msra.mxu0 0.0
        %1312 = vmatprep.subr.mxu0 0.0
        %1313 = vmatpush1.msra.mxu0 0.0
        %1314 = vmatprep.subr.mxu0 0.0
        %1315 = vmatpush1.msra.mxu0 0.0
        %1316 = vmatprep.subr.mxu0 0.0
        %1317 = vmatpush1.msra.mxu0 0.0
        %1318 = vmatprep.subr.mxu0 0.0
        %1319 = vmatpush1.msra.mxu0 0.0
        %1320 = vmatprep.subr.mxu0 0.0
        %1321 = vmatpush1.msra.mxu0 %v1285
        %1322 = vmatprep.subr.mxu0 0.0
        %1323 = vmatpush2.msra.mxu0 0.0
        %1324 = vmatprep.subr.mxu0 0.0
        %1325 = vmatpush2.msra.mxu0 0.0
        %1326 = vmatprep.subr.mxu0 0.0
        %1327 = vmatpush2.msra.mxu0 0.0
        %1328 = vmatprep.subr.mxu0 0.0
        %1329 = vmatpush2.msra.mxu0 0.0
        %1330 = vmatprep.subr.mxu0 0.0
        %1331 = vmatpush2.msra.mxu0 0.0
        %1332 = vmatprep.subr.mxu0 0.0
        %1333 = vmatpush2.msra.mxu0 0.0
        %1334 = vmatprep.subr.mxu0 0.0
        %1335 = vmatpush2.msra.mxu0 0.0
        %1336 = vmatprep.subr.mxu0 0.0
        %1337 = vmatpush2.msra.mxu0 0.0
        %1338 = vmatprep.subr.mxu0 0.0
        %1339 = vmatpush2.msra.mxu0 0.0
        %1340 = vmatprep.subr.mxu0 0.0
        %1341 = vmatpush2.msra.mxu0 0.0
        %1342 = vmatprep.subr.mxu0 0.0
        %1343 = vmatpush2.msra.mxu0 0.0
        %1344 = vmatprep.subr.mxu0 0.0
        %1345 = vmatpush2.msra.mxu0 0.0
        %1346 = vmatprep.subr.mxu0 0.0
        %1347 = vmatpush2.msra.mxu0 0.0
        %1348 = vmatprep.subr.mxu0 0.0
        %1349 = vmatpush2.msra.mxu0 0.0
        %1350 = vmatprep.subr.mxu0 0.0
        %1351 = vmatpush2.msra.mxu0 0.0
        %1352 = vmatprep.subr.mxu0 0.0
        %1353 = vmatpush2.msra.mxu0 0.0
        %1354 = vmatprep.mubr.f32.mxu0 0.0
        %1355 = vmatmul.mubr.f32.gmra.mxu0 %v1288
        %v1356 = vpop.f32.mrf.mxu0
        %v1357 = vadd.f32 0.0, %v1356
        %v1358 = vpop.f32.mrf.mxu0
        %1359 = vdwg.mxu0
        %v1360 = vrcp.pop %v1283
        %v1361 = vmul.f32 %v1357, %v1360
        %1363 = vrot.lane.b32.xlu0 %v1361, 20
        %v1364 = vpop.permute.xlu0 %1363
        %vm1366 = vcmask 195744
        %1367 = vst.msk [vmem:[#allocation3] sm:$0xff] %vm1366, %v1364
        %v1368 = vld [vmem:[#allocation2] sm:$0xff]
        %v1369 = vmul.f32 %v1368, 0.5
        %1371 = vrot.lane.b32.xlu0 %v1369, 104
        %v1372 = vpop.permute.xlu0 %1371
        %1374 = vrot.lane.b32.xlu0 %v1368, 72
        %v1375 = vpop.permute.xlu0 %1374
        %v1376 = vsel %vm328, %v1372, 0
        %v1378 = vsel %vm328, %v1375, 0
        %1380 = vmatprep.subr.mxu0 0.0
        %1381 = vmatpush1.xpose.msra.mxu0 0.0
        %1382 = vmatprep.subr.mxu0 0.0
        %1383 = vmatpush1.xpose.msra.mxu0 0.0
        %1384 = vmatprep.subr.mxu0 0.0
        %1385 = vmatpush1.xpose.msra.mxu0 0.0
        %1386 = vmatprep.subr.mxu0 0.0
        %1387 = vmatpush1.xpose.msra.mxu0 0.0
        %1388 = vmatprep.subr.mxu0 0.0
        %1389 = vmatpush1.xpose.msra.mxu0 0.0
        %1390 = vmatprep.subr.mxu0 0.0
        %1391 = vmatpush1.xpose.msra.mxu0 0.0
        %1392 = vmatprep.subr.mxu0 0.0
        %1393 = vmatpush1.xpose.msra.mxu0 0.0
        %1394 = vmatprep.subr.mxu0 0.0
        %1395 = vmatpush1.xpose.msra.mxu0 0.0
        %1396 = vmatprep.subr.mxu0 0.0
        %1397 = vmatpush1.xpose.msra.mxu0 0.0
        %1398 = vmatprep.subr.mxu0 0.0
        %1399 = vmatpush1.xpose.msra.mxu0 0.0
        %1400 = vmatprep.subr.mxu0 0.0
        %1401 = vmatpush1.xpose.msra.mxu0 0.0
        %1402 = vmatprep.subr.mxu0 0.0
        %1403 = vmatpush1.xpose.msra.mxu0 0.0
        %1404 = vmatprep.subr.mxu0 0.0
        %1405 = vmatpush1.xpose.msra.mxu0 0.0
        %1406 = vmatprep.subr.mxu0 0.0
        %1407 = vmatpush1.xpose.msra.mxu0 0.0
        %1408 = vmatprep.subr.mxu0 0.0
        %1409 = vmatpush1.xpose.msra.mxu0 0.0
        %1410 = vmatprep.subr.mxu0 0.0
        %1411 = vmatpush1.xpose.msra.mxu0 %v1378
        %1412 = vmatprep.subr.mxu0 0.0
        %1413 = vmatpush2.xpose.msra.mxu0 0.0
        %1414 = vmatprep.subr.mxu0 0.0
        %1415 = vmatpush2.xpose.msra.mxu0 0.0
        %1416 = vmatprep.subr.mxu0 0.0
        %1417 = vmatpush2.xpose.msra.mxu0 0.0
        %1418 = vmatprep.subr.mxu0 0.0
        %1419 = vmatpush2.xpose.msra.mxu0 0.0
        %1420 = vmatprep.subr.mxu0 0.0
        %1421 = vmatpush2.xpose.msra.mxu0 0.0
        %1422 = vmatprep.subr.mxu0 0.0
        %1423 = vmatpush2.xpose.msra.mxu0 0.0
        %1424 = vmatprep.subr.mxu0 0.0
        %1425 = vmatpush2.xpose.msra.mxu0 0.0
        %1426 = vmatprep.subr.mxu0 0.0
        %1427 = vmatpush2.xpose.msra.mxu0 0.0
        %1428 = vmatprep.subr.mxu0 0.0
        %1429 = vmatpush2.xpose.msra.mxu0 0.0
        %1430 = vmatprep.subr.mxu0 0.0
        %1431 = vmatpush2.xpose.msra.mxu0 0.0
        %1432 = vmatprep.subr.mxu0 0.0
        %1433 = vmatpush2.xpose.msra.mxu0 0.0
        %1434 = vmatprep.subr.mxu0 0.0
        %1435 = vmatpush2.xpose.msra.mxu0 0.0
        %1436 = vmatprep.subr.mxu0 0.0
        %1437 = vmatpush2.xpose.msra.mxu0 0.0
        %1438 = vmatprep.subr.mxu0 0.0
        %1439 = vmatpush2.xpose.msra.mxu0 0.0
        %1440 = vmatprep.subr.mxu0 0.0
        %1441 = vmatpush2.xpose.msra.mxu0 0.0
        %1442 = vmatprep.subr.mxu0 0.0
        %1443 = vmatpush2.xpose.msra.mxu0 0.0
        %1444 = vmatprep.mubr.f32.mxu0 0.0
        %1445 = vmatmul.mubr.f32.gmra.mxu0 %v1376
        %v1446 = vpop.f32.mrf.mxu0
        %v1447 = vadd.f32 0.0, %v1446
        %v1448 = vpop.f32.mrf.mxu0
        %1449 = vdwg.mxu0
        %v1450 = vsel %vm404, %v1447, -inf
        %1451 = vmax.xlane.f32.xlu0 %v1450
        %v1452 = vpop.xlane.xlu0 %1451
        %v1453 = vsub.f32 %v1447, %v1452
        %v1454 = vmul.f32 %v1453, 1.442695
        %v1455 = vpow.pop %v1454
        %v1456 = vsel %vm404, %v1455, 0.0
        %1457 = vadd.xlane.f32.xlu0 %v1456
        %v1458 = vpop.xlane.xlu0 %1457
        %1459 = vrot.lane.b32.xlu0 %v1368, 40
        %v1460 = vpop.permute.xlu0 %1459
        %v1463 = vsel %vm404, %v1455, 0
        %1465 = vmatprep.subr.mxu0 0.0
        %1466 = vmatpush1.msra.mxu0 0.0
        %1467 = vmatprep.subr.mxu0 0.0
        %1468 = vmatpush1.msra.mxu0 0.0
        %1469 = vmatprep.subr.mxu0 0.0
        %1470 = vmatpush1.msra.mxu0 0.0
        %1471 = vmatprep.subr.mxu0 0.0
        %1472 = vmatpush1.msra.mxu0 0.0
        %1473 = vmatprep.subr.mxu0 0.0
        %1474 = vmatpush1.msra.mxu0 0.0
        %1475 = vmatprep.subr.mxu0 0.0
        %1476 = vmatpush1.msra.mxu0 0.0
        %1477 = vmatprep.subr.mxu0 0.0
        %1478 = vmatpush1.msra.mxu0 0.0
        %1479 = vmatprep.subr.mxu0 0.0
        %1480 = vmatpush1.msra.mxu0 0.0
        %1481 = vmatprep.subr.mxu0 0.0
        %1482 = vmatpush1.msra.mxu0 0.0
        %1483 = vmatprep.subr.mxu0 0.0
        %1484 = vmatpush1.msra.mxu0 0.0
        %1485 = vmatprep.subr.mxu0 0.0
        %1486 = vmatpush1.msra.mxu0 0.0
        %1487 = vmatprep.subr.mxu0 0.0
        %1488 = vmatpush1.msra.mxu0 0.0
        %1489 = vmatprep.subr.mxu0 0.0
        %1490 = vmatpush1.msra.mxu0 0.0
        %1491 = vmatprep.subr.mxu0 0.0
        %1492 = vmatpush1.msra.mxu0 0.0
        %1493 = vmatprep.subr.mxu0 0.0
        %1494 = vmatpush1.msra.mxu0 0.0
        %1495 = vmatprep.subr.mxu0 0.0
        %1496 = vmatpush1.msra.mxu0 %v1460
        %1497 = vmatprep.subr.mxu0 0.0
        %1498 = vmatpush2.msra.mxu0 0.0
        %1499 = vmatprep.subr.mxu0 0.0
        %1500 = vmatpush2.msra.mxu0 0.0
        %1501 = vmatprep.subr.mxu0 0.0
        %1502 = vmatpush2.msra.mxu0 0.0
        %1503 = vmatprep.subr.mxu0 0.0
        %1504 = vmatpush2.msra.mxu0 0.0
        %1505 = vmatprep.subr.mxu0 0.0
        %1506 = vmatpush2.msra.mxu0 0.0
        %1507 = vmatprep.subr.mxu0 0.0
        %1508 = vmatpush2.msra.mxu0 0.0
        %1509 = vmatprep.subr.mxu0 0.0
        %1510 = vmatpush2.msra.mxu0 0.0
        %1511 = vmatprep.subr.mxu0 0.0
        %1512 = vmatpush2.msra.mxu0 0.0
        %1513 = vmatprep.subr.mxu0 0.0
        %1514 = vmatpush2.msra.mxu0 0.0
        %1515 = vmatprep.subr.mxu0 0.0
        %1516 = vmatpush2.msra.mxu0 0.0
        %1517 = vmatprep.subr.mxu0 0.0
        %1518 = vmatpush2.msra.mxu0 0.0
        %1519 = vmatprep.subr.mxu0 0.0
        %1520 = vmatpush2.msra.mxu0 0.0
        %1521 = vmatprep.subr.mxu0 0.0
        %1522 = vmatpush2.msra.mxu0 0.0
        %1523 = vmatprep.subr.mxu0 0.0
        %1524 = vmatpush2.msra.mxu0 0.0
        %1525 = vmatprep.subr.mxu0 0.0
        %1526 = vmatpush2.msra.mxu0 0.0
        %1527 = vmatprep.subr.mxu0 0.0
        %1528 = vmatpush2.msra.mxu0 0.0
        %1529 = vmatprep.mubr.f32.mxu0 0.0
        %1530 = vmatmul.mubr.f32.gmra.mxu0 %v1463
        %v1531 = vpop.f32.mrf.mxu0
        %v1532 = vadd.f32 0.0, %v1531
        %v1533 = vpop.f32.mrf.mxu0
        %1534 = vdwg.mxu0
        %v1535 = vrcp.pop %v1458
        %v1536 = vmul.f32 %v1532, %v1535
        %1538 = vrot.lane.b32.xlu0 %v1536, 24
        %v1539 = vpop.permute.xlu0 %1538
        %vm1541 = vcmask 228544
        %1542 = vst.msk [vmem:[#allocation3] sm:$0xff] %vm1541, %v1539
        %v1543 = vld [vmem:[#allocation2] sm:$0xff]
        %v1544 = vmul.f32 %v1543, 0.5
        %1546 = vrot.lane.b32.xlu0 %v1544, 100
        %v1547 = vpop.permute.xlu0 %1546
        %1549 = vrot.lane.b32.xlu0 %v1543, 68
        %v1550 = vpop.permute.xlu0 %1549
        %v1551 = vsel %vm328, %v1547, 0
        %v1553 = vsel %vm328, %v1550, 0
        %1555 = vmatprep.subr.mxu0 0.0
        %1556 = vmatpush1.xpose.msra.mxu0 0.0
        %1557 = vmatprep.subr.mxu0 0.0
        %1558 = vmatpush1.xpose.msra.mxu0 0.0
        %1559 = vmatprep.subr.mxu0 0.0
        %1560 = vmatpush1.xpose.msra.mxu0 0.0
        %1561 = vmatprep.subr.mxu0 0.0
        %1562 = vmatpush1.xpose.msra.mxu0 0.0
        %1563 = vmatprep.subr.mxu0 0.0
        %1564 = vmatpush1.xpose.msra.mxu0 0.0
        %1565 = vmatprep.subr.mxu0 0.0
        %1566 = vmatpush1.xpose.msra.mxu0 0.0
        %1567 = vmatprep.subr.mxu0 0.0
        %1568 = vmatpush1.xpose.msra.mxu0 0.0
        %1569 = vmatprep.subr.mxu0 0.0
        %1570 = vmatpush1.xpose.msra.mxu0 0.0
        %1571 = vmatprep.subr.mxu0 0.0
        %1572 = vmatpush1.xpose.msra.mxu0 0.0
        %1573 = vmatprep.subr.mxu0 0.0
        %1574 = vmatpush1.xpose.msra.mxu0 0.0
        %1575 = vmatprep.subr.mxu0 0.0
        %1576 = vmatpush1.xpose.msra.mxu0 0.0
        %1577 = vmatprep.subr.mxu0 0.0
        %1578 = vmatpush1.xpose.msra.mxu0 0.0
        %1579 = vmatprep.subr.mxu0 0.0
        %1580 = vmatpush1.xpose.msra.mxu0 0.0
        %1581 = vmatprep.subr.mxu0 0.0
        %1582 = vmatpush1.xpose.msra.mxu0 0.0
        %1583 = vmatprep.subr.mxu0 0.0
        %1584 = vmatpush1.xpose.msra.mxu0 0.0
        %1585 = vmatprep.subr.mxu0 0.0
        %1586 = vmatpush1.xpose.msra.mxu0 %v1553
        %1587 = vmatprep.subr.mxu0 0.0
        %1588 = vmatpush2.xpose.msra.mxu0 0.0
        %1589 = vmatprep.subr.mxu0 0.0
        %1590 = vmatpush2.xpose.msra.mxu0 0.0
        %1591 = vmatprep.subr.mxu0 0.0
        %1592 = vmatpush2.xpose.msra.mxu0 0.0
        %1593 = vmatprep.subr.mxu0 0.0
        %1594 = vmatpush2.xpose.msra.mxu0 0.0
        %1595 = vmatprep.subr.mxu0 0.0
        %1596 = vmatpush2.xpose.msra.mxu0 0.0
        %1597 = vmatprep.subr.mxu0 0.0
        %1598 = vmatpush2.xpose.msra.mxu0 0.0
        %1599 = vmatprep.subr.mxu0 0.0
        %1600 = vmatpush2.xpose.msra.mxu0 0.0
        %1601 = vmatprep.subr.mxu0 0.0
        %1602 = vmatpush2.xpose.msra.mxu0 0.0
        %1603 = vmatprep.subr.mxu0 0.0
        %1604 = vmatpush2.xpose.msra.mxu0 0.0
        %1605 = vmatprep.subr.mxu0 0.0
        %1606 = vmatpush2.xpose.msra.mxu0 0.0
        %1607 = vmatprep.subr.mxu0 0.0
        %1608 = vmatpush2.xpose.msra.mxu0 0.0
        %1609 = vmatprep.subr.mxu0 0.0
        %1610 = vmatpush2.xpose.msra.mxu0 0.0
        %1611 = vmatprep.subr.mxu0 0.0
        %1612 = vmatpush2.xpose.msra.mxu0 0.0
        %1613 = vmatprep.subr.mxu0 0.0
        %1614 = vmatpush2.xpose.msra.mxu0 0.0
        %1615 = vmatprep.subr.mxu0 0.0
        %1616 = vmatpush2.xpose.msra.mxu0 0.0
        %1617 = vmatprep.subr.mxu0 0.0
        %1618 = vmatpush2.xpose.msra.mxu0 0.0
        %1619 = vmatprep.mubr.f32.mxu0 0.0
        %1620 = vmatmul.mubr.f32.gmra.mxu0 %v1551
        %v1621 = vpop.f32.mrf.mxu0
        %v1622 = vadd.f32 0.0, %v1621
        %v1623 = vpop.f32.mrf.mxu0
        %1624 = vdwg.mxu0
        %v1625 = vsel %vm404, %v1622, -inf
        %1626 = vmax.xlane.f32.xlu0 %v1625
        %v1627 = vpop.xlane.xlu0 %1626
        %v1628 = vsub.f32 %v1622, %v1627
        %v1629 = vmul.f32 %v1628, 1.442695
        %v1630 = vpow.pop %v1629
        %v1631 = vsel %vm404, %v1630, 0.0
        %1632 = vadd.xlane.f32.xlu0 %v1631
        %v1633 = vpop.xlane.xlu0 %1632
        %1634 = vrot.lane.b32.xlu0 %v1543, 36
        %v1635 = vpop.permute.xlu0 %1634
        %v1638 = vsel %vm404, %v1630, 0
        %1640 = vmatprep.subr.mxu0 0.0
        %1641 = vmatpush1.msra.mxu0 0.0
        %1642 = vmatprep.subr.mxu0 0.0
        %1643 = vmatpush1.msra.mxu0 0.0
        %1644 = vmatprep.subr.mxu0 0.0
        %1645 = vmatpush1.msra.mxu0 0.0
        %1646 = vmatprep.subr.mxu0 0.0
        %1647 = vmatpush1.msra.mxu0 0.0
        %1648 = vmatprep.subr.mxu0 0.0
        %1649 = vmatpush1.msra.mxu0 0.0
        %1650 = vmatprep.subr.mxu0 0.0
        %1651 = vmatpush1.msra.mxu0 0.0
        %1652 = vmatprep.subr.mxu0 0.0
        %1653 = vmatpush1.msra.mxu0 0.0
        %1654 = vmatprep.subr.mxu0 0.0
        %1655 = vmatpush1.msra.mxu0 0.0
        %1656 = vmatprep.subr.mxu0 0.0
        %1657 = vmatpush1.msra.mxu0 0.0
        %1658 = vmatprep.subr.mxu0 0.0
        %1659 = vmatpush1.msra.mxu0 0.0
        %1660 = vmatprep.subr.mxu0 0.0
        %1661 = vmatpush1.msra.mxu0 0.0
        %1662 = vmatprep.subr.mxu0 0.0
        %1663 = vmatpush1.msra.mxu0 0.0
        %1664 = vmatprep.subr.mxu0 0.0
        %1665 = vmatpush1.msra.mxu0 0.0
        %1666 = vmatprep.subr.mxu0 0.0
        %1667 = vmatpush1.msra.mxu0 0.0
        %1668 = vmatprep.subr.mxu0 0.0
        %1669 = vmatpush1.msra.mxu0 0.0
        %1670 = vmatprep.subr.mxu0 0.0
        %1671 = vmatpush1.msra.mxu0 %v1635
        %1672 = vmatprep.subr.mxu0 0.0
        %1673 = vmatpush2.msra.mxu0 0.0
        %1674 = vmatprep.subr.mxu0 0.0
        %1675 = vmatpush2.msra.mxu0 0.0
        %1676 = vmatprep.subr.mxu0 0.0
        %1677 = vmatpush2.msra.mxu0 0.0
        %1678 = vmatprep.subr.mxu0 0.0
        %1679 = vmatpush2.msra.mxu0 0.0
        %1680 = vmatprep.subr.mxu0 0.0
        %1681 = vmatpush2.msra.mxu0 0.0
        %1682 = vmatprep.subr.mxu0 0.0
        %1683 = vmatpush2.msra.mxu0 0.0
        %1684 = vmatprep.subr.mxu0 0.0
        %1685 = vmatpush2.msra.mxu0 0.0
        %1686 = vmatprep.subr.mxu0 0.0
        %1687 = vmatpush2.msra.mxu0 0.0
        %1688 = vmatprep.subr.mxu0 0.0
        %1689 = vmatpush2.msra.mxu0 0.0
        %1690 = vmatprep.subr.mxu0 0.0
        %1691 = vmatpush2.msra.mxu0 0.0
        %1692 = vmatprep.subr.mxu0 0.0
        %1693 = vmatpush2.msra.mxu0 0.0
        %1694 = vmatprep.subr.mxu0 0.0
        %1695 = vmatpush2.msra.mxu0 0.0
        %1696 = vmatprep.subr.mxu0 0.0
        %1697 = vmatpush2.msra.mxu0 0.0
        %1698 = vmatprep.subr.mxu0 0.0
        %1699 = vmatpush2.msra.mxu0 0.0
        %1700 = vmatprep.subr.mxu0 0.0
        %1701 = vmatpush2.msra.mxu0 0.0
        %1702 = vmatprep.subr.mxu0 0.0
        %1703 = vmatpush2.msra.mxu0 0.0
        %1704 = vmatprep.mubr.f32.mxu0 0.0
        %1705 = vmatmul.mubr.f32.gmra.mxu0 %v1638
        %v1706 = vpop.f32.mrf.mxu0
        %v1707 = vadd.f32 0.0, %v1706
        %v1708 = vpop.f32.mrf.mxu0
        %1709 = vdwg.mxu0
        %v1710 = vrcp.pop %v1633
        %v1711 = vmul.f32 %v1707, %v1710
        %1713 = vrot.lane.b32.xlu0 %v1711, 28
        %v1714 = vpop.permute.xlu0 %1713
        %vm1716 = vcmask 261344
        %1717 = vst.msk [vmem:[#allocation3] sm:$0xff] %vm1716, %v1714
        %v1718 = vld [vmem:[#allocation3] sm:$0xff]
        %v1719 = vld [vmem:[#allocation9] sm:$0xff]
        %v1720 = vld [vmem:[#allocation9 + $0x8] sm:$0xff]
        %v1721 = vld [vmem:[#allocation9 + $0x10] sm:$0xff]
        %v1722 = vld [vmem:[#allocation9 + $0x18] sm:$0xff]
        %v1723 = vld [vmem:[%s3] sm:$0x1]
        %v1725 = vlaneseq
        %v1726 = vshrl.u32 %v1725, 7
        %v1727 = vsub.s32 0, %v1726
        %v1728 = vrot.slane %v1723, %v1727
        %v1731 = vsel %vm247, %v1718, 0
        %1733 = vmatprep.subr.mxu0 0.0
        %1734 = vmatpush1.msra.mxu0 0.0
        %1735 = vmatprep.subr.mxu0 0.0
        %1736 = vmatpush1.msra.mxu0 0.0
        %1737 = vmatprep.subr.mxu0 0.0
        %1738 = vmatpush1.msra.mxu0 0.0
        %1739 = vmatprep.subr.mxu0 0.0
        %1740 = vmatpush1.msra.mxu0 0.0
        %1741 = vmatprep.subr.mxu0 0.0
        %1742 = vmatpush1.msra.mxu0 0.0
        %1743 = vmatprep.subr.mxu0 0.0
        %1744 = vmatpush1.msra.mxu0 0.0
        %1745 = vmatprep.subr.mxu0 0.0
        %1746 = vmatpush1.msra.mxu0 0.0
        %1747 = vmatprep.subr.mxu0 0.0
        %1748 = vmatpush1.msra.mxu0 0.0
        %1749 = vmatprep.subr.mxu0 0.0
        %1750 = vmatpush1.msra.mxu0 0.0
        %1751 = vmatprep.subr.mxu0 0.0
        %1752 = vmatpush1.msra.mxu0 0.0
        %1753 = vmatprep.subr.mxu0 0.0
        %1754 = vmatpush1.msra.mxu0 0.0
        %1755 = vmatprep.subr.mxu0 0.0
        %1756 = vmatpush1.msra.mxu0 0.0
        %1757 = vmatprep.subr.mxu0 0.0
        %1758 = vmatpush1.msra.mxu0 %v1722
        %1759 = vmatprep.subr.mxu0 0.0
        %1760 = vmatpush1.msra.mxu0 %v1721
        %1761 = vmatprep.subr.mxu0 0.0
        %1762 = vmatpush1.msra.mxu0 %v1720
        %1763 = vmatprep.subr.mxu0 0.0
        %1764 = vmatpush1.msra.mxu0 %v1719
        %1765 = vmatprep.subr.mxu0 0.0
        %1766 = vmatpush2.msra.mxu0 0.0
        %1767 = vmatprep.subr.mxu0 0.0
        %1768 = vmatpush2.msra.mxu0 0.0
        %1769 = vmatprep.subr.mxu0 0.0
        %1770 = vmatpush2.msra.mxu0 0.0
        %1771 = vmatprep.subr.mxu0 0.0
        %1772 = vmatpush2.msra.mxu0 0.0
        %1773 = vmatprep.subr.mxu0 0.0
        %1774 = vmatpush2.msra.mxu0 0.0
        %1775 = vmatprep.subr.mxu0 0.0
        %1776 = vmatpush2.msra.mxu0 0.0
        %1777 = vmatprep.subr.mxu0 0.0
        %1778 = vmatpush2.msra.mxu0 0.0
        %1779 = vmatprep.subr.mxu0 0.0
        %1780 = vmatpush2.msra.mxu0 0.0
        %1781 = vmatprep.subr.mxu0 0.0
        %1782 = vmatpush2.msra.mxu0 0.0
        %1783 = vmatprep.subr.mxu0 0.0
        %1784 = vmatpush2.msra.mxu0 0.0
        %1785 = vmatprep.subr.mxu0 0.0
        %1786 = vmatpush2.msra.mxu0 0.0
        %1787 = vmatprep.subr.mxu0 0.0
        %1788 = vmatpush2.msra.mxu0 0.0
        %1789 = vmatprep.subr.mxu0 0.0
        %1790 = vmatpush2.msra.mxu0 0.0
        %1791 = vmatprep.subr.mxu0 0.0
        %1792 = vmatpush2.msra.mxu0 0.0
        %1793 = vmatprep.subr.mxu0 0.0
        %1794 = vmatpush2.msra.mxu0 0.0
        %1795 = vmatprep.subr.mxu0 0.0
        %1796 = vmatpush2.msra.mxu0 0.0
        %1797 = vmatprep.mubr.f32.mxu0 0.0
        %1798 = vmatmul.mubr.f32.gmra.mxu0 %v1731
        %v1799 = vpop.f32.mrf.mxu0
        %v1800 = vadd.f32 %v1728, %v1799
        %v1801 = vpop.f32.mrf.mxu0
        %1802 = vdwg.mxu0
        %1803 = vst.msk [vmem:[%s241] sm:$0xff] %vm247, %v1800
        %s1804 = sand.u32 %s119, 1
        %s1805 = scalar_lea.sflag [#allocation6], %s1804
        %s1806 = sand.u32 %s119, 1
        %s1807 = smul.addr %s1806, 8
        %s1808 = scalar_lea.vmem [#allocation10], %s1807
        // Predicated region
        $region49: #{tpu_custom_call.1} parent=35 // pred_check
          %p1809 = pneg %p129
        $region50: #{tpu_custom_call.1} parent=35 // pred_check_branch
          %1811 = sbr.rel (%p1809) target = $region52
        $region51: #{tpu_custom_call.1} parent=35 // pred_region
          %s1813 = ssub.s32 128, 128
          %1814 = vsyncadd %s1805, %s1813
          %s1815 = smul.addr %s22, 128
          %s1816 = scalar_lea.hbm %s4, %s1815
          %s1818 = sshll.u32 %s1808, 4
          %s1819 = int_to_ptr.vmem [resolvable:$true] %s1818
          %1821 = dma.vmem_to_hbm [thread:$0]  %s1819, 128, %s1816, %s1805
        $region52: #{tpu_custom_call.1} parent=35 // pred_fallthru
          _
      $region36: #{tpu_custom_call.1} parent=5 // pred_fallthru
        _
      %p1822 = scmp.le.s32.totalorder 2, %s17
      // Predicated region
      $region53: #{tpu_custom_call.1} parent=5 // pred_check
        %p1823 = pneg %p1822
      $region54: #{tpu_custom_call.1} parent=5 // pred_check_branch
        %1825 = sbr.rel (%p1823) target = $region56
      $region55: #{tpu_custom_call.1} parent=5 // pred_region
        %s1826 = ssub.s32 %s17, 2
        // Predicated region
        $region57: #{tpu_custom_call.1} parent=55 // pred_check
          %p1827 = pneg %p135
        $region58: #{tpu_custom_call.1} parent=55 // pred_check_branch
          %1829 = sbr.rel (%p1827) target = $region60
        $region59: #{tpu_custom_call.1} parent=55 // pred_region
          %s1830 = sand.u32 %s120, 1
          %s1831 = scalar_lea.sflag [#allocation6], %s1830
          %s1832 = sand.u32 %s120, 1
          %s1833 = smul.addr %s1832, 8
          %s1834 = scalar_lea.vmem [#allocation10], %s1833
          %1835 = dma.done %s1831, 128
        $region60: #{tpu_custom_call.1} parent=55 // pred_fallthru
          _
      $region56: #{tpu_custom_call.1} parent=5 // pred_fallthru
        _
    $region6: #{tpu_custom_call.1} parent=1 // loop_footer
      %s21 = sadd.s32 1, %s17
    $region7: #{tpu_custom_call.1} parent=1 // loop_footer_branch
      %16 = sbr.rel target = $region3
    $region8: #{tpu_custom_call.1} parent=1 // loop_exit
      _
    %1836 = vsyncpa [#allocation5], 1
    %s1837 = scalar_lea.sflag [#allocation5], 1
    %1838 = vsyncpa %s1837, 1
    %1839 = vsyncpa [#allocation8], 1
    %1840 = vsyncpa [#allocation6], 1
    %s1841 = scalar_lea.sflag [#allocation6], 1
    %1842 = vsyncpa %s1841, 1

</llo_original>
